<compile_context>
chip_gen: v5e
topology: v5e:2x2
jax: 0.10.0
libtpu: 0.0.40
codegen_flags: <defaults>
</compile_context>

<pallas_src>
import jax
import jax.numpy as jnp
import numpy as np
from jax.experimental import pallas as pl
from jax.experimental.pallas import tpu as pltpu


# ---------------------------------------------------------------------------
# Fused kernel: input projection + bidirectional recurrence + fused Linear heads
# ---------------------------------------------------------------------------
def _bilstm_fused_kernel(x_ref, wih_f_ref, wih_b_ref, whh_f_ref, whh_b_ref,
                         bias_f_ref, bias_b_ref, wemb_f_ref, wemb_b_ref,
                         bemb_ref, out_ref,
                         xgf_ref, xgb_ref, recf_ref, recb_ref):
    T, Bp, nIn = x_ref.shape
    H4 = wih_f_ref.shape[1]          # 4*H (gate order i,f,g,o — PyTorch layout)
    H = H4 // 4
    NoutP = out_ref.shape[2]

    # ---- hoisted input projection (dense, per direction, bias folded).
    #      One big MXU matmul per direction over the whole (T*Bp, nIn) slab.
    x_flat = x_ref[...].reshape(T * Bp, nIn)
    xgf_ref[...] = (jnp.dot(x_flat, wih_f_ref[...],
                            preferred_element_type=jnp.float32)
                    + bias_f_ref[...]).reshape(T, Bp, H4)
    xgb_ref[...] = (jnp.dot(x_flat, wih_b_ref[...],
                            preferred_element_type=jnp.float32)
                    + bias_b_ref[...]).reshape(T, Bp, H4)

    whh_f = whh_f_ref[...]           # (H, 4H) dense
    whh_b = whh_b_ref[...]           # (H, 4H) dense

    def cell(g, c):
        i = jax.nn.sigmoid(g[:, 0:H])
        f = jax.nn.sigmoid(g[:, H:2 * H])
        gg = jnp.tanh(g[:, 2 * H:3 * H])
        o = jax.nn.sigmoid(g[:, 3 * H:4 * H])
        c_new = f * c + i * gg
        h_new = o * jnp.tanh(c_new)
        return h_new, c_new

    def body(t, carry):
        h_f, c_f, h_b, c_b = carry
        tb = T - 1 - t
        # one dense (Bp,H)@(H,4H) MXU dot per direction per step
        g_f = jnp.dot(h_f, whh_f, preferred_element_type=jnp.float32) + xgf_ref[t]
        g_b = jnp.dot(h_b, whh_b, preferred_element_type=jnp.float32) + xgb_ref[tb]
        h_f, c_f = cell(g_f, c_f)
        h_b, c_b = cell(g_b, c_b)
        recf_ref[t] = h_f            # forward hidden at time t
        recb_ref[tb] = h_b           # backward hidden at time T-1-t
        return h_f, c_f, h_b, c_b

    z = jnp.zeros((Bp, H), jnp.float32)
    unroll = T if T <= 16 else 8
    jax.lax.fori_loop(0, T, body, (z, z, z, z), unroll=unroll)

    # ---- fused embedding heads: rec never leaves VMEM; output is lane-dense
    #      (NoutP is a multiple of 128; padding columns of wemb/bemb are zero).
    recf = recf_ref[...].reshape(T * Bp, H)
    recb = recb_ref[...].reshape(T * Bp, H)
    out = (jnp.dot(recf, wemb_f_ref[...], preferred_element_type=jnp.float32)
           + jnp.dot(recb, wemb_b_ref[...], preferred_element_type=jnp.float32)
           + bemb_ref[...])
    out_ref[...] = out.reshape(T, Bp, NoutP)


# ---------------------------------------------------------------------------
# Parameters (deterministic, PyTorch-style uniform init shapes)
# ---------------------------------------------------------------------------
def init_params(key, nIn, nHidden, nOut):
    k = 1.0 / np.sqrt(nHidden)
    k2 = 1.0 / np.sqrt(2 * nHidden)
    keys = jax.random.split(key, 12)
    u = lambda kk, shape, s: jax.random.uniform(kk, shape, jnp.float32, -s, s)
    return dict(
        w_ih_f=u(keys[0], (4 * nHidden, nIn), k),
        w_hh_f=u(keys[1], (4 * nHidden, nHidden), k),
        b_ih_f=u(keys[2], (4 * nHidden,), k),
        b_hh_f=u(keys[3], (4 * nHidden,), k),
        w_ih_b=u(keys[4], (4 * nHidden, nIn), k),
        w_hh_b=u(keys[5], (4 * nHidden, nHidden), k),
        b_ih_b=u(keys[6], (4 * nHidden,), k),
        b_hh_b=u(keys[7], (4 * nHidden,), k),
        w_emb1=u(keys[8], (nOut, 2 * nHidden), k2),
        b_emb1=u(keys[9], (nOut,), k2),
        w_emb2=u(keys[10], (nOut, 2 * nHidden), k2),
        b_emb2=u(keys[11], (nOut,), k2),
    )


def _vmem_cap_bytes():
    """Physical per-TensorCore VMEM: 128 MiB (v5e/v6e), 64 MiB (v7x)."""
    try:
        return int(pltpu.get_tpu_info().vmem_capacity_bytes)
    except Exception:
        return 64 * 2 ** 20      # conservative fallback (v7x-sized)


# ---------------------------------------------------------------------------
# Forward wrapper: layout plumbing in plain JAX, everything else in one kernel
# ---------------------------------------------------------------------------
def bidirectional_lstm_forward(x, params, nHidden, nOut):
    B, nIn, T = x.shape
    H = nHidden
    H4 = 4 * H
    f32 = jnp.float32

    # (B, nIn, T) -> time-major (T, B, nIn); pad batch to a multiple of 8 sublanes
    xt = jnp.transpose(x, (2, 0, 1)).astype(f32)
    Bp = ((B + 7) // 8) * 8
    if Bp != B:
        xt = jnp.pad(xt, ((0, 0), (0, Bp - B), (0, 0)))

    # dense per-direction weights (no block-diagonal zeros anywhere)
    wih_f = params["w_ih_f"].T                               # (nIn, 4H)
    wih_b = params["w_ih_b"].T                               # (nIn, 4H)
    whh_f = params["w_hh_f"].T                               # (H,   4H)
    whh_b = params["w_hh_b"].T                               # (H,   4H)
    bias_f = (params["b_ih_f"] + params["b_hh_f"])[None, :]  # (1, 4H)
    bias_b = (params["b_ih_b"] + params["b_hh_b"])[None, :]  # (1, 4H)

    # fused embedding heads, split per direction slab; zero-pad output columns
    # up to a multiple of 128 lanes so the final stores are unmasked vst's.
    nOut2 = 2 * nOut
    NoutP = ((nOut2 + 127) // 128) * 128
    wemb_f = jnp.concatenate([params["w_emb1"][:, :H].T,
                              params["w_emb2"][:, :H].T], axis=1)   # (H, 2*nOut)
    wemb_b = jnp.concatenate([params["w_emb1"][:, H:].T,
                              params["w_emb2"][:, H:].T], axis=1)   # (H, 2*nOut)
    bemb = jnp.concatenate([params["b_emb1"], params["b_emb2"]])[None, :]
    if NoutP != nOut2:
        wemb_f = jnp.pad(wemb_f, ((0, 0), (0, NoutP - nOut2)))
        wemb_b = jnp.pad(wemb_b, ((0, 0), (0, NoutP - nOut2)))
        bemb = jnp.pad(bemb, ((0, 0), (0, NoutP - nOut2)))

    # VMEM budget: actual working set x2 slack, capped below physical VMEM
    n_bytes = 4 * (xt.size + wih_f.size + wih_b.size + whh_f.size + whh_b.size
                   + bias_f.size + bias_b.size
                   + wemb_f.size + wemb_b.size + bemb.size
                   + T * Bp * (2 * H4 + 2 * H + NoutP))
    vmem_limit = int(min(int(0.78 * _vmem_cap_bytes()),
                         max(8 * 2 ** 20, 2 * n_bytes)))

    vmem = pl.BlockSpec(memory_space=pltpu.MemorySpace.VMEM)
    out = pl.pallas_call(
        _bilstm_fused_kernel,
        out_shape=jax.ShapeDtypeStruct((T, Bp, NoutP), f32),
        in_specs=[vmem] * 10,
        out_specs=vmem,
        scratch_shapes=[
            pltpu.VMEM((T, Bp, H4), f32),   # forward input projections
            pltpu.VMEM((T, Bp, H4), f32),   # backward input projections
            pltpu.VMEM((T, Bp, H), f32),    # forward hidden slab
            pltpu.VMEM((T, Bp, H), f32),    # backward hidden slab
        ],
        compiler_params=pltpu.CompilerParams(vmem_limit_bytes=vmem_limit),
    )(xt, wih_f, wih_b, whh_f, whh_b, bias_f, bias_b, wemb_f, wemb_b, bemb)

    out = out[:, :B, :]                                    # drop batch padding
    out1 = jnp.transpose(out[:, :, :nOut], (1, 2, 0))      # (B, nOut, T)
    out2 = jnp.transpose(out[:, :, nOut:nOut2], (1, 2, 0))
    return out1, out2


# ---------------------------------------------------------------------------
# Pure-JAX reference (same math as torch.nn.LSTM bidirectional + two Linears)
# ---------------------------------------------------------------------------
def _lstm_dir_ref(x_tbi, wih, whh, b_ih, b_hh):
    H = whh.shape[1]
    b = b_ih + b_hh

    def step(carry, xt):
        h, c = carry
        g = xt @ wih.T + h @ whh.T + b
        i = jax.nn.sigmoid(g[:, :H])
        f = jax.nn.sigmoid(g[:, H:2 * H])
        gg = jnp.tanh(g[:, 2 * H:3 * H])
        o = jax.nn.sigmoid(g[:, 3 * H:])
        c = f * c + i * gg
        h = o * jnp.tanh(c)
        return (h, c), h

    B = x_tbi.shape[1]
    init = (jnp.zeros((B, H), jnp.float32), jnp.zeros((B, H), jnp.float32))
    _, hs = jax.lax.scan(step, init, x_tbi)
    return hs                                               # (T, B, H)


def reference_forward(x, params, nHidden, nOut):
    B, nIn, T = x.shape
    xt = jnp.transpose(x, (2, 0, 1)).astype(jnp.float32)
    hf = _lstm_dir_ref(xt, params["w_ih_f"], params["w_hh_f"],
                       params["b_ih_f"], params["b_hh_f"])
    hb = _lstm_dir_ref(xt[::-1], params["w_ih_b"], params["w_hh_b"],
                       params["b_ih_b"], params["b_hh_b"])[::-1]
    rec = jnp.concatenate([hf, hb], axis=-1).reshape(T * B, 2 * nHidden)
    o1 = rec @ params["w_emb1"].T + params["b_emb1"]
    o2 = rec @ params["w_emb2"].T + params["b_emb2"]
    o1 = o1.reshape(T, B, nOut).transpose(1, 2, 0)
    o2 = o2.reshape(T, B, nOut).transpose(1, 2, 0)
    return o1, o2


if __name__ == "__main__":
    B, nIn, T = 2, 4, 8
    nHidden, nOut = 32, 8

    key = jax.random.PRNGKey(0)
    kx, kp = jax.random.split(key)
    x = jax.random.normal(kx, (B, nIn, T), jnp.float32)
    params = init_params(kp, nIn, nHidden, nOut)

    fwd = jax.jit(bidirectional_lstm_forward, static_argnums=(2, 3))
    out1, out2 = fwd(x, params, nHidden, nOut)
    out1 = jax.block_until_ready(out1)
    out2 = jax.block_until_ready(out2)

    ref1, ref2 = reference_forward(x, params, nHidden, nOut)
    assert out1.shape == (B, nOut, T) and out2.shape == (B, nOut, T)
    # 5e-4 tolerance: default TPU matmul precision may round operands to bf16,
    # and the fused/hoisted dots change summation order slightly.
    np.testing.assert_allclose(np.asarray(out1), np.asarray(ref1),
                               rtol=5e-4, atol=5e-4)
    np.testing.assert_allclose(np.asarray(out2), np.asarray(ref2),
                               rtol=5e-4, atol=5e-4)

    print("KERNEL_OK")
</pallas_src>

<mosaic_0001>
module attributes {stable_mosaic.version = 11 : i64} {
  func.func @_bilstm_fused_kernel(%arg0: memref<8x8x4xf32, #tpu.memory_space<vmem>>, %arg1: memref<4x128xf32, #tpu.memory_space<vmem>>, %arg2: memref<4x128xf32, #tpu.memory_space<vmem>>, %arg3: memref<32x128xf32, #tpu.memory_space<vmem>>, %arg4: memref<32x128xf32, #tpu.memory_space<vmem>>, %arg5: memref<1x128xf32, #tpu.memory_space<vmem>>, %arg6: memref<1x128xf32, #tpu.memory_space<vmem>>, %arg7: memref<32x128xf32, #tpu.memory_space<vmem>>, %arg8: memref<32x128xf32, #tpu.memory_space<vmem>>, %arg9: memref<1x128xf32, #tpu.memory_space<vmem>>, %arg10: memref<8x8x128xf32, #tpu.memory_space<vmem>>, %arg11: memref<8x8x128xf32, #tpu.memory_space<vmem>>, %arg12: memref<8x8x128xf32, #tpu.memory_space<vmem>>, %arg13: memref<8x8x32xf32, #tpu.memory_space<vmem>>, %arg14: memref<8x8x32xf32, #tpu.memory_space<vmem>>) attributes {dimension_semantics = [], scalar_prefetch = 0 : i64, scratch_operands = 4 : i64, tpu.core_type = #tpu.core_type<tc>} {
    %c0 = arith.constant 0 : index
    %c0_0 = arith.constant 0 : index
    %c0_1 = arith.constant 0 : index
    %0 = vector.load %arg0[%c0, %c0_0, %c0_1] : memref<8x8x4xf32, #tpu.memory_space<vmem>>, vector<8x8x4xf32>
    %1 = vector.shape_cast %0 : vector<8x8x4xf32> to vector<64x4xf32>
    %c0_2 = arith.constant 0 : index
    %c0_3 = arith.constant 0 : index
    %2 = vector.load %arg1[%c0_2, %c0_3] : memref<4x128xf32, #tpu.memory_space<vmem>>, vector<4x128xf32>
    %cst = arith.constant dense<0.000000e+00> : vector<64x128xf32>
    %3 = tpu.matmul %1, %2, %cst {dimension_numbers = #tpu.dot_dimension_numbers<[1], [0], [0], [1], [0, 0, 1, 1], [], []>} : vector<64x4xf32>, vector<4x128xf32>, vector<64x128xf32> -> vector<64x128xf32>
    %c0_4 = arith.constant 0 : index
    %c0_5 = arith.constant 0 : index
    %4 = vector.load %arg5[%c0_4, %c0_5] : memref<1x128xf32, #tpu.memory_space<vmem>>, vector<1x128xf32>
    %5 = vector.broadcast %4 : vector<1x128xf32> to vector<64x128xf32>
    %6 = arith.addf %3, %5 : vector<64x128xf32>
    %7 = vector.shape_cast %6 : vector<64x128xf32> to vector<8x8x128xf32>
    %c0_6 = arith.constant 0 : index
    %c0_7 = arith.constant 0 : index
    %c0_8 = arith.constant 0 : index
    %8 = vector.load %arg11[%c0_6, %c0_7, %c0_8] : memref<8x8x128xf32, #tpu.memory_space<vmem>>, vector<8x8x128xf32>
    tpu.vector_store %arg11[%c0_6, %c0_7, %c0_8], %7 {strides = array<i32>} : memref<8x8x128xf32, #tpu.memory_space<vmem>>, vector<8x8x128xf32>,
    %c0_9 = arith.constant 0 : index
    %c0_10 = arith.constant 0 : index
    %9 = vector.load %arg2[%c0_9, %c0_10] : memref<4x128xf32, #tpu.memory_space<vmem>>, vector<4x128xf32>
    %cst_11 = arith.constant dense<0.000000e+00> : vector<64x128xf32>
    %10 = tpu.matmul %1, %9, %cst_11 {dimension_numbers = #tpu.dot_dimension_numbers<[1], [0], [0], [1], [0, 0, 1, 1], [], []>} : vector<64x4xf32>, vector<4x128xf32>, vector<64x128xf32> -> vector<64x128xf32>
    %c0_12 = arith.constant 0 : index
    %c0_13 = arith.constant 0 : index
    %11 = vector.load %arg6[%c0_12, %c0_13] : memref<1x128xf32, #tpu.memory_space<vmem>>, vector<1x128xf32>
    %12 = vector.broadcast %11 : vector<1x128xf32> to vector<64x128xf32>
    %13 = arith.addf %10, %12 : vector<64x128xf32>
    %14 = vector.shape_cast %13 : vector<64x128xf32> to vector<8x8x128xf32>
    %c0_14 = arith.constant 0 : index
    %c0_15 = arith.constant 0 : index
    %c0_16 = arith.constant 0 : index
    %15 = vector.load %arg12[%c0_14, %c0_15, %c0_16] : memref<8x8x128xf32, #tpu.memory_space<vmem>>, vector<8x8x128xf32>
    tpu.vector_store %arg12[%c0_14, %c0_15, %c0_16], %14 {strides = array<i32>} : memref<8x8x128xf32, #tpu.memory_space<vmem>>, vector<8x8x128xf32>,
    %c0_17 = arith.constant 0 : index
    %c0_18 = arith.constant 0 : index
    %16 = vector.load %arg3[%c0_17, %c0_18] : memref<32x128xf32, #tpu.memory_space<vmem>>, vector<32x128xf32>
    %c0_19 = arith.constant 0 : index
    %c0_20 = arith.constant 0 : index
    %17 = vector.load %arg4[%c0_19, %c0_20] : memref<32x128xf32, #tpu.memory_space<vmem>>, vector<32x128xf32>
    %cst_21 = arith.constant 0.000000e+00 : f32
    %18 = vector.broadcast %cst_21 : f32 to vector<8x32xf32>
    %c0_i32 = arith.constant 0 : i32
    %c7_i32 = arith.constant 7 : i32
    %19 = arith.subi %c7_i32, %c0_i32 : i32
    %cst_22 = arith.constant dense<0.000000e+00> : vector<8x128xf32>
    %20 = tpu.matmul %18, %16, %cst_22 {dimension_numbers = #tpu.dot_dimension_numbers<[1], [0], [0], [1], [0, 0, 1, 1], [], []>} : vector<8x32xf32>, vector<32x128xf32>, vector<8x128xf32> -> vector<8x128xf32>
    %21 = arith.index_cast %c0_i32 : i32 to index
    %c0_23 = arith.constant 0 : index
    %c0_24 = arith.constant 0 : index
    %22 = vector.load %arg11[%21, %c0_23, %c0_24] : memref<8x8x128xf32, #tpu.memory_space<vmem>>, vector<1x8x128xf32>
    %23 = vector.shape_cast %22 : vector<1x8x128xf32> to vector<8x128xf32>
    %24 = arith.addf %20, %23 : vector<8x128xf32>
    %cst_25 = arith.constant dense<0.000000e+00> : vector<8x128xf32>
    %25 = tpu.matmul %18, %17, %cst_25 {dimension_numbers = #tpu.dot_dimension_numbers<[1], [0], [0], [1], [0, 0, 1, 1], [], []>} : vector<8x32xf32>, vector<32x128xf32>, vector<8x128xf32> -> vector<8x128xf32>
    %26 = arith.index_cast %19 : i32 to index
    %c0_26 = arith.constant 0 : index
    %c0_27 = arith.constant 0 : index
    %27 = vector.load %arg12[%26, %c0_26, %c0_27] : memref<8x8x128xf32, #tpu.memory_space<vmem>>, vector<1x8x128xf32>
    %28 = vector.shape_cast %27 : vector<1x8x128xf32> to vector<8x128xf32>
    %29 = arith.addf %25, %28 : vector<8x128xf32>
    %30 = vector.extract_strided_slice %24 {offsets = [0, 0], sizes = [8, 32], strides = [1, 1]} : vector<8x128xf32> to vector<8x32xf32>
    %31 = arith.negf %30 : vector<8x32xf32>
    %32 = math.exp %31 : vector<8x32xf32>
    %cst_28 = arith.constant 1.000000e+00 : f32
    %33 = vector.broadcast %cst_28 : f32 to vector<8x32xf32>
    %34 = arith.addf %33, %32 : vector<8x32xf32>
    %35 = arith.divf %33, %34 : vector<8x32xf32>
    %36 = vector.extract_strided_slice %24 {offsets = [0, 32], sizes = [8, 32], strides = [1, 1]} : vector<8x128xf32> to vector<8x32xf32>
    %37 = arith.negf %36 : vector<8x32xf32>
    %38 = math.exp %37 : vector<8x32xf32>
    %cst_29 = arith.constant 1.000000e+00 : f32
    %39 = vector.broadcast %cst_29 : f32 to vector<8x32xf32>
    %40 = arith.addf %39, %38 : vector<8x32xf32>
    %41 = arith.divf %39, %40 : vector<8x32xf32>
    %42 = vector.extract_strided_slice %24 {offsets = [0, 64], sizes = [8, 32], strides = [1, 1]} : vector<8x128xf32> to vector<8x32xf32>
    %43 = math.tanh %42 : vector<8x32xf32>
    %44 = vector.extract_strided_slice %24 {offsets = [0, 96], sizes = [8, 32], strides = [1, 1]} : vector<8x128xf32> to vector<8x32xf32>
    %45 = arith.negf %44 : vector<8x32xf32>
    %46 = math.exp %45 : vector<8x32xf32>
    %cst_30 = arith.constant 1.000000e+00 : f32
    %47 = vector.broadcast %cst_30 : f32 to vector<8x32xf32>
    %48 = arith.addf %47, %46 : vector<8x32xf32>
    %49 = arith.divf %47, %48 : vector<8x32xf32>
    %50 = arith.mulf %41, %18 : vector<8x32xf32>
    %51 = arith.mulf %35, %43 : vector<8x32xf32>
    %52 = arith.addf %50, %51 : vector<8x32xf32>
    %53 = math.tanh %52 : vector<8x32xf32>
    %54 = arith.mulf %49, %53 : vector<8x32xf32>
    %55 = vector.extract_strided_slice %29 {offsets = [0, 0], sizes = [8, 32], strides = [1, 1]} : vector<8x128xf32> to vector<8x32xf32>
    %56 = arith.negf %55 : vector<8x32xf32>
    %57 = math.exp %56 : vector<8x32xf32>
    %cst_31 = arith.constant 1.000000e+00 : f32
    %58 = vector.broadcast %cst_31 : f32 to vector<8x32xf32>
    %59 = arith.addf %58, %57 : vector<8x32xf32>
    %60 = arith.divf %58, %59 : vector<8x32xf32>
    %61 = vector.extract_strided_slice %29 {offsets = [0, 32], sizes = [8, 32], strides = [1, 1]} : vector<8x128xf32> to vector<8x32xf32>
    %62 = arith.negf %61 : vector<8x32xf32>
    %63 = math.exp %62 : vector<8x32xf32>
    %cst_32 = arith.constant 1.000000e+00 : f32
    %64 = vector.broadcast %cst_32 : f32 to vector<8x32xf32>
    %65 = arith.addf %64, %63 : vector<8x32xf32>
    %66 = arith.divf %64, %65 : vector<8x32xf32>
    %67 = vector.extract_strided_slice %29 {offsets = [0, 64], sizes = [8, 32], strides = [1, 1]} : vector<8x128xf32> to vector<8x32xf32>
    %68 = math.tanh %67 : vector<8x32xf32>
    %69 = vector.extract_strided_slice %29 {offsets = [0, 96], sizes = [8, 32], strides = [1, 1]} : vector<8x128xf32> to vector<8x32xf32>
    %70 = arith.negf %69 : vector<8x32xf32>
    %71 = math.exp %70 : vector<8x32xf32>
    %cst_33 = arith.constant 1.000000e+00 : f32
    %72 = vector.broadcast %cst_33 : f32 to vector<8x32xf32>
    %73 = arith.addf %72, %71 : vector<8x32xf32>
    %74 = arith.divf %72, %73 : vector<8x32xf32>
    %75 = arith.mulf %66, %18 : vector<8x32xf32>
    %76 = arith.mulf %60, %68 : vector<8x32xf32>
    %77 = arith.addf %75, %76 : vector<8x32xf32>
    %78 = math.tanh %77 : vector<8x32xf32>
    %79 = arith.mulf %74, %78 : vector<8x32xf32>
    %80 = arith.index_cast %c0_i32 : i32 to index
    %c0_34 = arith.constant 0 : index
    %c0_35 = arith.constant 0 : index
    %81 = vector.load %arg13[%80, %c0_34, %c0_35] : memref<8x8x32xf32, #tpu.memory_space<vmem>>, vector<1x8x32xf32>
    %82 = vector.shape_cast %81 : vector<1x8x32xf32> to vector<8x32xf32>
    %83 = vector.shape_cast %54 : vector<8x32xf32> to vector<1x8x32xf32>
    tpu.vector_store %arg13[%80, %c0_34, %c0_35], %83 {strides = array<i32>} : memref<8x8x32xf32, #tpu.memory_space<vmem>>, vector<1x8x32xf32>,
    %84 = arith.index_cast %19 : i32 to index
    %c0_36 = arith.constant 0 : index
    %c0_37 = arith.constant 0 : index
    %85 = vector.load %arg14[%84, %c0_36, %c0_37] : memref<8x8x32xf32, #tpu.memory_space<vmem>>, vector<1x8x32xf32>
    %86 = vector.shape_cast %85 : vector<1x8x32xf32> to vector<8x32xf32>
    %87 = vector.shape_cast %79 : vector<8x32xf32> to vector<1x8x32xf32>
    tpu.vector_store %arg14[%84, %c0_36, %c0_37], %87 {strides = array<i32>} : memref<8x8x32xf32, #tpu.memory_space<vmem>>, vector<1x8x32xf32>,
    %c1_i32 = arith.constant 1 : i32
    %c7_i32_38 = arith.constant 7 : i32
    %88 = arith.subi %c7_i32_38, %c1_i32 : i32
    %cst_39 = arith.constant dense<0.000000e+00> : vector<8x128xf32>
    %89 = tpu.matmul %54, %16, %cst_39 {dimension_numbers = #tpu.dot_dimension_numbers<[1], [0], [0], [1], [0, 0, 1, 1], [], []>} : vector<8x32xf32>, vector<32x128xf32>, vector<8x128xf32> -> vector<8x128xf32>
    %90 = arith.index_cast %c1_i32 : i32 to index
    %c0_40 = arith.constant 0 : index
    %c0_41 = arith.constant 0 : index
    %91 = vector.load %arg11[%90, %c0_40, %c0_41] : memref<8x8x128xf32, #tpu.memory_space<vmem>>, vector<1x8x128xf32>
    %92 = vector.shape_cast %91 : vector<1x8x128xf32> to vector<8x128xf32>
    %93 = arith.addf %89, %92 : vector<8x128xf32>
    %cst_42 = arith.constant dense<0.000000e+00> : vector<8x128xf32>
    %94 = tpu.matmul %79, %17, %cst_42 {dimension_numbers = #tpu.dot_dimension_numbers<[1], [0], [0], [1], [0, 0, 1, 1], [], []>} : vector<8x32xf32>, vector<32x128xf32>, vector<8x128xf32> -> vector<8x128xf32>
    %95 = arith.index_cast %88 : i32 to index
    %c0_43 = arith.constant 0 : index
    %c0_44 = arith.constant 0 : index
    %96 = vector.load %arg12[%95, %c0_43, %c0_44] : memref<8x8x128xf32, #tpu.memory_space<vmem>>, vector<1x8x128xf32>
    %97 = vector.shape_cast %96 : vector<1x8x128xf32> to vector<8x128xf32>
    %98 = arith.addf %94, %97 : vector<8x128xf32>
    %99 = vector.extract_strided_slice %93 {offsets = [0, 0], sizes = [8, 32], strides = [1, 1]} : vector<8x128xf32> to vector<8x32xf32>
    %100 = arith.negf %99 : vector<8x32xf32>
    %101 = math.exp %100 : vector<8x32xf32>
    %cst_45 = arith.constant 1.000000e+00 : f32
    %102 = vector.broadcast %cst_45 : f32 to vector<8x32xf32>
    %103 = arith.addf %102, %101 : vector<8x32xf32>
    %104 = arith.divf %102, %103 : vector<8x32xf32>
    %105 = vector.extract_strided_slice %93 {offsets = [0, 32], sizes = [8, 32], strides = [1, 1]} : vector<8x128xf32> to vector<8x32xf32>
    %106 = arith.negf %105 : vector<8x32xf32>
    %107 = math.exp %106 : vector<8x32xf32>
    %cst_46 = arith.constant 1.000000e+00 : f32
    %108 = vector.broadcast %cst_46 : f32 to vector<8x32xf32>
    %109 = arith.addf %108, %107 : vector<8x32xf32>
    %110 = arith.divf %108, %109 : vector<8x32xf32>
    %111 = vector.extract_strided_slice %93 {offsets = [0, 64], sizes = [8, 32], strides = [1, 1]} : vector<8x128xf32> to vector<8x32xf32>
    %112 = math.tanh %111 : vector<8x32xf32>
    %113 = vector.extract_strided_slice %93 {offsets = [0, 96], sizes = [8, 32], strides = [1, 1]} : vector<8x128xf32> to vector<8x32xf32>
    %114 = arith.negf %113 : vector<8x32xf32>
    %115 = math.exp %114 : vector<8x32xf32>
    %cst_47 = arith.constant 1.000000e+00 : f32
    %116 = vector.broadcast %cst_47 : f32 to vector<8x32xf32>
    %117 = arith.addf %116, %115 : vector<8x32xf32>
    %118 = arith.divf %116, %117 : vector<8x32xf32>
    %119 = arith.mulf %110, %52 : vector<8x32xf32>
    %120 = arith.mulf %104, %112 : vector<8x32xf32>
    %121 = arith.addf %119, %120 : vector<8x32xf32>
    %122 = math.tanh %121 : vector<8x32xf32>
    %123 = arith.mulf %118, %122 : vector<8x32xf32>
    %124 = vector.extract_strided_slice %98 {offsets = [0, 0], sizes = [8, 32], strides = [1, 1]} : vector<8x128xf32> to vector<8x32xf32>
    %125 = arith.negf %124 : vector<8x32xf32>
    %126 = math.exp %125 : vector<8x32xf32>
    %cst_48 = arith.constant 1.000000e+00 : f32
    %127 = vector.broadcast %cst_48 : f32 to vector<8x32xf32>
    %128 = arith.addf %127, %126 : vector<8x32xf32>
    %129 = arith.divf %127, %128 : vector<8x32xf32>
    %130 = vector.extract_strided_slice %98 {offsets = [0, 32], sizes = [8, 32], strides = [1, 1]} : vector<8x128xf32> to vector<8x32xf32>
    %131 = arith.negf %130 : vector<8x32xf32>
    %132 = math.exp %131 : vector<8x32xf32>
    %cst_49 = arith.constant 1.000000e+00 : f32
    %133 = vector.broadcast %cst_49 : f32 to vector<8x32xf32>
    %134 = arith.addf %133, %132 : vector<8x32xf32>
    %135 = arith.divf %133, %134 : vector<8x32xf32>
    %136 = vector.extract_strided_slice %98 {offsets = [0, 64], sizes = [8, 32], strides = [1, 1]} : vector<8x128xf32> to vector<8x32xf32>
    %137 = math.tanh %136 : vector<8x32xf32>
    %138 = vector.extract_strided_slice %98 {offsets = [0, 96], sizes = [8, 32], strides = [1, 1]} : vector<8x128xf32> to vector<8x32xf32>
    %139 = arith.negf %138 : vector<8x32xf32>
    %140 = math.exp %139 : vector<8x32xf32>
    %cst_50 = arith.constant 1.000000e+00 : f32
    %141 = vector.broadcast %cst_50 : f32 to vector<8x32xf32>
    %142 = arith.addf %141, %140 : vector<8x32xf32>
    %143 = arith.divf %141, %142 : vector<8x32xf32>
    %144 = arith.mulf %135, %77 : vector<8x32xf32>
    %145 = arith.mulf %129, %137 : vector<8x32xf32>
    %146 = arith.addf %144, %145 : vector<8x32xf32>
    %147 = math.tanh %146 : vector<8x32xf32>
    %148 = arith.mulf %143, %147 : vector<8x32xf32>
    %149 = arith.index_cast %c1_i32 : i32 to index
    %c0_51 = arith.constant 0 : index
    %c0_52 = arith.constant 0 : index
    %150 = vector.load %arg13[%149, %c0_51, %c0_52] : memref<8x8x32xf32, #tpu.memory_space<vmem>>, vector<1x8x32xf32>
    %151 = vector.shape_cast %150 : vector<1x8x32xf32> to vector<8x32xf32>
    %152 = vector.shape_cast %123 : vector<8x32xf32> to vector<1x8x32xf32>
    tpu.vector_store %arg13[%149, %c0_51, %c0_52], %152 {strides = array<i32>} : memref<8x8x32xf32, #tpu.memory_space<vmem>>, vector<1x8x32xf32>,
    %153 = arith.index_cast %88 : i32 to index
    %c0_53 = arith.constant 0 : index
    %c0_54 = arith.constant 0 : index
    %154 = vector.load %arg14[%153, %c0_53, %c0_54] : memref<8x8x32xf32, #tpu.memory_space<vmem>>, vector<1x8x32xf32>
    %155 = vector.shape_cast %154 : vector<1x8x32xf32> to vector<8x32xf32>
    %156 = vector.shape_cast %148 : vector<8x32xf32> to vector<1x8x32xf32>
    tpu.vector_store %arg14[%153, %c0_53, %c0_54], %156 {strides = array<i32>} : memref<8x8x32xf32, #tpu.memory_space<vmem>>, vector<1x8x32xf32>,
    %c2_i32 = arith.constant 2 : i32
    %c7_i32_55 = arith.constant 7 : i32
    %157 = arith.subi %c7_i32_55, %c2_i32 : i32
    %cst_56 = arith.constant dense<0.000000e+00> : vector<8x128xf32>
    %158 = tpu.matmul %123, %16, %cst_56 {dimension_numbers = #tpu.dot_dimension_numbers<[1], [0], [0], [1], [0, 0, 1, 1], [], []>} : vector<8x32xf32>, vector<32x128xf32>, vector<8x128xf32> -> vector<8x128xf32>
    %159 = arith.index_cast %c2_i32 : i32 to index
    %c0_57 = arith.constant 0 : index
    %c0_58 = arith.constant 0 : index
    %160 = vector.load %arg11[%159, %c0_57, %c0_58] : memref<8x8x128xf32, #tpu.memory_space<vmem>>, vector<1x8x128xf32>
    %161 = vector.shape_cast %160 : vector<1x8x128xf32> to vector<8x128xf32>
    %162 = arith.addf %158, %161 : vector<8x128xf32>
    %cst_59 = arith.constant dense<0.000000e+00> : vector<8x128xf32>
    %163 = tpu.matmul %148, %17, %cst_59 {dimension_numbers = #tpu.dot_dimension_numbers<[1], [0], [0], [1], [0, 0, 1, 1], [], []>} : vector<8x32xf32>, vector<32x128xf32>, vector<8x128xf32> -> vector<8x128xf32>
    %164 = arith.index_cast %157 : i32 to index
    %c0_60 = arith.constant 0 : index
    %c0_61 = arith.constant 0 : index
    %165 = vector.load %arg12[%164, %c0_60, %c0_61] : memref<8x8x128xf32, #tpu.memory_space<vmem>>, vector<1x8x128xf32>
    %166 = vector.shape_cast %165 : vector<1x8x128xf32> to vector<8x128xf32>
    %167 = arith.addf %163, %166 : vector<8x128xf32>
    %168 = vector.extract_strided_slice %162 {offsets = [0, 0], sizes = [8, 32], strides = [1, 1]} : vector<8x128xf32> to vector<8x32xf32>
    %169 = arith.negf %168 : vector<8x32xf32>
    %170 = math.exp %169 : vector<8x32xf32>
    %cst_62 = arith.constant 1.000000e+00 : f32
    %171 = vector.broadcast %cst_62 : f32 to vector<8x32xf32>
    %172 = arith.addf %171, %170 : vector<8x32xf32>
    %173 = arith.divf %171, %172 : vector<8x32xf32>
    %174 = vector.extract_strided_slice %162 {offsets = [0, 32], sizes = [8, 32], strides = [1, 1]} : vector<8x128xf32> to vector<8x32xf32>
    %175 = arith.negf %174 : vector<8x32xf32>
    %176 = math.exp %175 : vector<8x32xf32>
    %cst_63 = arith.constant 1.000000e+00 : f32
    %177 = vector.broadcast %cst_63 : f32 to vector<8x32xf32>
    %178 = arith.addf %177, %176 : vector<8x32xf32>
    %179 = arith.divf %177, %178 : vector<8x32xf32>
    %180 = vector.extract_strided_slice %162 {offsets = [0, 64], sizes = [8, 32], strides = [1, 1]} : vector<8x128xf32> to vector<8x32xf32>
    %181 = math.tanh %180 : vector<8x32xf32>
    %182 = vector.extract_strided_slice %162 {offsets = [0, 96], sizes = [8, 32], strides = [1, 1]} : vector<8x128xf32> to vector<8x32xf32>
    %183 = arith.negf %182 : vector<8x32xf32>
    %184 = math.exp %183 : vector<8x32xf32>
    %cst_64 = arith.constant 1.000000e+00 : f32
    %185 = vector.broadcast %cst_64 : f32 to vector<8x32xf32>
    %186 = arith.addf %185, %184 : vector<8x32xf32>
    %187 = arith.divf %185, %186 : vector<8x32xf32>
    %188 = arith.mulf %179, %121 : vector<8x32xf32>
    %189 = arith.mulf %173, %181 : vector<8x32xf32>
    %190 = arith.addf %188, %189 : vector<8x32xf32>
    %191 = math.tanh %190 : vector<8x32xf32>
    %192 = arith.mulf %187, %191 : vector<8x32xf32>
    %193 = vector.extract_strided_slice %167 {offsets = [0, 0], sizes = [8, 32], strides = [1, 1]} : vector<8x128xf32> to vector<8x32xf32>
    %194 = arith.negf %193 : vector<8x32xf32>
    %195 = math.exp %194 : vector<8x32xf32>
    %cst_65 = arith.constant 1.000000e+00 : f32
    %196 = vector.broadcast %cst_65 : f32 to vector<8x32xf32>
    %197 = arith.addf %196, %195 : vector<8x32xf32>
    %198 = arith.divf %196, %197 : vector<8x32xf32>
    %199 = vector.extract_strided_slice %167 {offsets = [0, 32], sizes = [8, 32], strides = [1, 1]} : vector<8x128xf32> to vector<8x32xf32>
    %200 = arith.negf %199 : vector<8x32xf32>
    %201 = math.exp %200 : vector<8x32xf32>
    %cst_66 = arith.constant 1.000000e+00 : f32
    %202 = vector.broadcast %cst_66 : f32 to vector<8x32xf32>
    %203 = arith.addf %202, %201 : vector<8x32xf32>
    %204 = arith.divf %202, %203 : vector<8x32xf32>
    %205 = vector.extract_strided_slice %167 {offsets = [0, 64], sizes = [8, 32], strides = [1, 1]} : vector<8x128xf32> to vector<8x32xf32>
    %206 = math.tanh %205 : vector<8x32xf32>
    %207 = vector.extract_strided_slice %167 {offsets = [0, 96], sizes = [8, 32], strides = [1, 1]} : vector<8x128xf32> to vector<8x32xf32>
    %208 = arith.negf %207 : vector<8x32xf32>
    %209 = math.exp %208 : vector<8x32xf32>
    %cst_67 = arith.constant 1.000000e+00 : f32
    %210 = vector.broadcast %cst_67 : f32 to vector<8x32xf32>
    %211 = arith.addf %210, %209 : vector<8x32xf32>
    %212 = arith.divf %210, %211 : vector<8x32xf32>
    %213 = arith.mulf %204, %146 : vector<8x32xf32>
    %214 = arith.mulf %198, %206 : vector<8x32xf32>
    %215 = arith.addf %213, %214 : vector<8x32xf32>
    %216 = math.tanh %215 : vector<8x32xf32>
    %217 = arith.mulf %212, %216 : vector<8x32xf32>
    %218 = arith.index_cast %c2_i32 : i32 to index
    %c0_68 = arith.constant 0 : index
    %c0_69 = arith.constant 0 : index
    %219 = vector.load %arg13[%218, %c0_68, %c0_69] : memref<8x8x32xf32, #tpu.memory_space<vmem>>, vector<1x8x32xf32>
    %220 = vector.shape_cast %219 : vector<1x8x32xf32> to vector<8x32xf32>
    %221 = vector.shape_cast %192 : vector<8x32xf32> to vector<1x8x32xf32>
    tpu.vector_store %arg13[%218, %c0_68, %c0_69], %221 {strides = array<i32>} : memref<8x8x32xf32, #tpu.memory_space<vmem>>, vector<1x8x32xf32>,
    %222 = arith.index_cast %157 : i32 to index
    %c0_70 = arith.constant 0 : index
    %c0_71 = arith.constant 0 : index
    %223 = vector.load %arg14[%222, %c0_70, %c0_71] : memref<8x8x32xf32, #tpu.memory_space<vmem>>, vector<1x8x32xf32>
    %224 = vector.shape_cast %223 : vector<1x8x32xf32> to vector<8x32xf32>
    %225 = vector.shape_cast %217 : vector<8x32xf32> to vector<1x8x32xf32>
    tpu.vector_store %arg14[%222, %c0_70, %c0_71], %225 {strides = array<i32>} : memref<8x8x32xf32, #tpu.memory_space<vmem>>, vector<1x8x32xf32>,
    %c3_i32 = arith.constant 3 : i32
    %c7_i32_72 = arith.constant 7 : i32
    %226 = arith.subi %c7_i32_72, %c3_i32 : i32
    %cst_73 = arith.constant dense<0.000000e+00> : vector<8x128xf32>
    %227 = tpu.matmul %192, %16, %cst_73 {dimension_numbers = #tpu.dot_dimension_numbers<[1], [0], [0], [1], [0, 0, 1, 1], [], []>} : vector<8x32xf32>, vector<32x128xf32>, vector<8x128xf32> -> vector<8x128xf32>
    %228 = arith.index_cast %c3_i32 : i32 to index
    %c0_74 = arith.constant 0 : index
    %c0_75 = arith.constant 0 : index
    %229 = vector.load %arg11[%228, %c0_74, %c0_75] : memref<8x8x128xf32, #tpu.memory_space<vmem>>, vector<1x8x128xf32>
    %230 = vector.shape_cast %229 : vector<1x8x128xf32> to vector<8x128xf32>
    %231 = arith.addf %227, %230 : vector<8x128xf32>
    %cst_76 = arith.constant dense<0.000000e+00> : vector<8x128xf32>
    %232 = tpu.matmul %217, %17, %cst_76 {dimension_numbers = #tpu.dot_dimension_numbers<[1], [0], [0], [1], [0, 0, 1, 1], [], []>} : vector<8x32xf32>, vector<32x128xf32>, vector<8x128xf32> -> vector<8x128xf32>
    %233 = arith.index_cast %226 : i32 to index
    %c0_77 = arith.constant 0 : index
    %c0_78 = arith.constant 0 : index
    %234 = vector.load %arg12[%233, %c0_77, %c0_78] : memref<8x8x128xf32, #tpu.memory_space<vmem>>, vector<1x8x128xf32>
    %235 = vector.shape_cast %234 : vector<1x8x128xf32> to vector<8x128xf32>
    %236 = arith.addf %232, %235 : vector<8x128xf32>
    %237 = vector.extract_strided_slice %231 {offsets = [0, 0], sizes = [8, 32], strides = [1, 1]} : vector<8x128xf32> to vector<8x32xf32>
    %238 = arith.negf %237 : vector<8x32xf32>
    %239 = math.exp %238 : vector<8x32xf32>
    %cst_79 = arith.constant 1.000000e+00 : f32
    %240 = vector.broadcast %cst_79 : f32 to vector<8x32xf32>
    %241 = arith.addf %240, %239 : vector<8x32xf32>
    %242 = arith.divf %240, %241 : vector<8x32xf32>
    %243 = vector.extract_strided_slice %231 {offsets = [0, 32], sizes = [8, 32], strides = [1, 1]} : vector<8x128xf32> to vector<8x32xf32>
    %244 = arith.negf %243 : vector<8x32xf32>
    %245 = math.exp %244 : vector<8x32xf32>
    %cst_80 = arith.constant 1.000000e+00 : f32
    %246 = vector.broadcast %cst_80 : f32 to vector<8x32xf32>
    %247 = arith.addf %246, %245 : vector<8x32xf32>
    %248 = arith.divf %246, %247 : vector<8x32xf32>
    %249 = vector.extract_strided_slice %231 {offsets = [0, 64], sizes = [8, 32], strides = [1, 1]} : vector<8x128xf32> to vector<8x32xf32>
    %250 = math.tanh %249 : vector<8x32xf32>
    %251 = vector.extract_strided_slice %231 {offsets = [0, 96], sizes = [8, 32], strides = [1, 1]} : vector<8x128xf32> to vector<8x32xf32>
    %252 = arith.negf %251 : vector<8x32xf32>
    %253 = math.exp %252 : vector<8x32xf32>
    %cst_81 = arith.constant 1.000000e+00 : f32
    %254 = vector.broadcast %cst_81 : f32 to vector<8x32xf32>
    %255 = arith.addf %254, %253 : vector<8x32xf32>
    %256 = arith.divf %254, %255 : vector<8x32xf32>
    %257 = arith.mulf %248, %190 : vector<8x32xf32>
    %258 = arith.mulf %242, %250 : vector<8x32xf32>
    %259 = arith.addf %257, %258 : vector<8x32xf32>
    %260 = math.tanh %259 : vector<8x32xf32>
    %261 = arith.mulf %256, %260 : vector<8x32xf32>
    %262 = vector.extract_strided_slice %236 {offsets = [0, 0], sizes = [8, 32], strides = [1, 1]} : vector<8x128xf32> to vector<8x32xf32>
    %263 = arith.negf %262 : vector<8x32xf32>
    %264 = math.exp %263 : vector<8x32xf32>
    %cst_82 = arith.constant 1.000000e+00 : f32
    %265 = vector.broadcast %cst_82 : f32 to vector<8x32xf32>
    %266 = arith.addf %265, %264 : vector<8x32xf32>
    %267 = arith.divf %265, %266 : vector<8x32xf32>
    %268 = vector.extract_strided_slice %236 {offsets = [0, 32], sizes = [8, 32], strides = [1, 1]} : vector<8x128xf32> to vector<8x32xf32>
    %269 = arith.negf %268 : vector<8x32xf32>
    %270 = math.exp %269 : vector<8x32xf32>
    %cst_83 = arith.constant 1.000000e+00 : f32
    %271 = vector.broadcast %cst_83 : f32 to vector<8x32xf32>
    %272 = arith.addf %271, %270 : vector<8x32xf32>
    %273 = arith.divf %271, %272 : vector<8x32xf32>
    %274 = vector.extract_strided_slice %236 {offsets = [0, 64], sizes = [8, 32], strides = [1, 1]} : vector<8x128xf32> to vector<8x32xf32>
    %275 = math.tanh %274 : vector<8x32xf32>
    %276 = vector.extract_strided_slice %236 {offsets = [0, 96], sizes = [8, 32], strides = [1, 1]} : vector<8x128xf32> to vector<8x32xf32>
    %277 = arith.negf %276 : vector<8x32xf32>
    %278 = math.exp %277 : vector<8x32xf32>
    %cst_84 = arith.constant 1.000000e+00 : f32
    %279 = vector.broadcast %cst_84 : f32 to vector<8x32xf32>
    %280 = arith.addf %279, %278 : vector<8x32xf32>
    %281 = arith.divf %279, %280 : vector<8x32xf32>
    %282 = arith.mulf %273, %215 : vector<8x32xf32>
    %283 = arith.mulf %267, %275 : vector<8x32xf32>
    %284 = arith.addf %282, %283 : vector<8x32xf32>
    %285 = math.tanh %284 : vector<8x32xf32>
    %286 = arith.mulf %281, %285 : vector<8x32xf32>
    %287 = arith.index_cast %c3_i32 : i32 to index
    %c0_85 = arith.constant 0 : index
    %c0_86 = arith.constant 0 : index
    %288 = vector.load %arg13[%287, %c0_85, %c0_86] : memref<8x8x32xf32, #tpu.memory_space<vmem>>, vector<1x8x32xf32>
    %289 = vector.shape_cast %288 : vector<1x8x32xf32> to vector<8x32xf32>
    %290 = vector.shape_cast %261 : vector<8x32xf32> to vector<1x8x32xf32>
    tpu.vector_store %arg13[%287, %c0_85, %c0_86], %290 {strides = array<i32>} : memref<8x8x32xf32, #tpu.memory_space<vmem>>, vector<1x8x32xf32>,
    %291 = arith.index_cast %226 : i32 to index
    %c0_87 = arith.constant 0 : index
    %c0_88 = arith.constant 0 : index
    %292 = vector.load %arg14[%291, %c0_87, %c0_88] : memref<8x8x32xf32, #tpu.memory_space<vmem>>, vector<1x8x32xf32>
    %293 = vector.shape_cast %292 : vector<1x8x32xf32> to vector<8x32xf32>
    %294 = vector.shape_cast %286 : vector<8x32xf32> to vector<1x8x32xf32>
    tpu.vector_store %arg14[%291, %c0_87, %c0_88], %294 {strides = array<i32>} : memref<8x8x32xf32, #tpu.memory_space<vmem>>, vector<1x8x32xf32>,
    %c4_i32 = arith.constant 4 : i32
    %c7_i32_89 = arith.constant 7 : i32
    %295 = arith.subi %c7_i32_89, %c4_i32 : i32
    %cst_90 = arith.constant dense<0.000000e+00> : vector<8x128xf32>
    %296 = tpu.matmul %261, %16, %cst_90 {dimension_numbers = #tpu.dot_dimension_numbers<[1], [0], [0], [1], [0, 0, 1, 1], [], []>} : vector<8x32xf32>, vector<32x128xf32>, vector<8x128xf32> -> vector<8x128xf32>
    %297 = arith.index_cast %c4_i32 : i32 to index
    %c0_91 = arith.constant 0 : index
    %c0_92 = arith.constant 0 : index
    %298 = vector.load %arg11[%297, %c0_91, %c0_92] : memref<8x8x128xf32, #tpu.memory_space<vmem>>, vector<1x8x128xf32>
    %299 = vector.shape_cast %298 : vector<1x8x128xf32> to vector<8x128xf32>
    %300 = arith.addf %296, %299 : vector<8x128xf32>
    %cst_93 = arith.constant dense<0.000000e+00> : vector<8x128xf32>
    %301 = tpu.matmul %286, %17, %cst_93 {dimension_numbers = #tpu.dot_dimension_numbers<[1], [0], [0], [1], [0, 0, 1, 1], [], []>} : vector<8x32xf32>, vector<32x128xf32>, vector<8x128xf32> -> vector<8x128xf32>
    %302 = arith.index_cast %295 : i32 to index
    %c0_94 = arith.constant 0 : index
    %c0_95 = arith.constant 0 : index
    %303 = vector.load %arg12[%302, %c0_94, %c0_95] : memref<8x8x128xf32, #tpu.memory_space<vmem>>, vector<1x8x128xf32>
    %304 = vector.shape_cast %303 : vector<1x8x128xf32> to vector<8x128xf32>
    %305 = arith.addf %301, %304 : vector<8x128xf32>
    %306 = vector.extract_strided_slice %300 {offsets = [0, 0], sizes = [8, 32], strides = [1, 1]} : vector<8x128xf32> to vector<8x32xf32>
    %307 = arith.negf %306 : vector<8x32xf32>
    %308 = math.exp %307 : vector<8x32xf32>
    %cst_96 = arith.constant 1.000000e+00 : f32
    %309 = vector.broadcast %cst_96 : f32 to vector<8x32xf32>
    %310 = arith.addf %309, %308 : vector<8x32xf32>
    %311 = arith.divf %309, %310 : vector<8x32xf32>
    %312 = vector.extract_strided_slice %300 {offsets = [0, 32], sizes = [8, 32], strides = [1, 1]} : vector<8x128xf32> to vector<8x32xf32>
    %313 = arith.negf %312 : vector<8x32xf32>
    %314 = math.exp %313 : vector<8x32xf32>
    %cst_97 = arith.constant 1.000000e+00 : f32
    %315 = vector.broadcast %cst_97 : f32 to vector<8x32xf32>
    %316 = arith.addf %315, %314 : vector<8x32xf32>
    %317 = arith.divf %315, %316 : vector<8x32xf32>
    %318 = vector.extract_strided_slice %300 {offsets = [0, 64], sizes = [8, 32], strides = [1, 1]} : vector<8x128xf32> to vector<8x32xf32>
    %319 = math.tanh %318 : vector<8x32xf32>
    %320 = vector.extract_strided_slice %300 {offsets = [0, 96], sizes = [8, 32], strides = [1, 1]} : vector<8x128xf32> to vector<8x32xf32>
    %321 = arith.negf %320 : vector<8x32xf32>
    %322 = math.exp %321 : vector<8x32xf32>
    %cst_98 = arith.constant 1.000000e+00 : f32
    %323 = vector.broadcast %cst_98 : f32 to vector<8x32xf32>
    %324 = arith.addf %323, %322 : vector<8x32xf32>
    %325 = arith.divf %323, %324 : vector<8x32xf32>
    %326 = arith.mulf %317, %259 : vector<8x32xf32>
    %327 = arith.mulf %311, %319 : vector<8x32xf32>
    %328 = arith.addf %326, %327 : vector<8x32xf32>
    %329 = math.tanh %328 : vector<8x32xf32>
    %330 = arith.mulf %325, %329 : vector<8x32xf32>
    %331 = vector.extract_strided_slice %305 {offsets = [0, 0], sizes = [8, 32], strides = [1, 1]} : vector<8x128xf32> to vector<8x32xf32>
    %332 = arith.negf %331 : vector<8x32xf32>
    %333 = math.exp %332 : vector<8x32xf32>
    %cst_99 = arith.constant 1.000000e+00 : f32
    %334 = vector.broadcast %cst_99 : f32 to vector<8x32xf32>
    %335 = arith.addf %334, %333 : vector<8x32xf32>
    %336 = arith.divf %334, %335 : vector<8x32xf32>
    %337 = vector.extract_strided_slice %305 {offsets = [0, 32], sizes = [8, 32], strides = [1, 1]} : vector<8x128xf32> to vector<8x32xf32>
    %338 = arith.negf %337 : vector<8x32xf32>
    %339 = math.exp %338 : vector<8x32xf32>
    %cst_100 = arith.constant 1.000000e+00 : f32
    %340 = vector.broadcast %cst_100 : f32 to vector<8x32xf32>
    %341 = arith.addf %340, %339 : vector<8x32xf32>
    %342 = arith.divf %340, %341 : vector<8x32xf32>
    %343 = vector.extract_strided_slice %305 {offsets = [0, 64], sizes = [8, 32], strides = [1, 1]} : vector<8x128xf32> to vector<8x32xf32>
    %344 = math.tanh %343 : vector<8x32xf32>
    %345 = vector.extract_strided_slice %305 {offsets = [0, 96], sizes = [8, 32], strides = [1, 1]} : vector<8x128xf32> to vector<8x32xf32>
    %346 = arith.negf %345 : vector<8x32xf32>
    %347 = math.exp %346 : vector<8x32xf32>
    %cst_101 = arith.constant 1.000000e+00 : f32
    %348 = vector.broadcast %cst_101 : f32 to vector<8x32xf32>
    %349 = arith.addf %348, %347 : vector<8x32xf32>
    %350 = arith.divf %348, %349 : vector<8x32xf32>
    %351 = arith.mulf %342, %284 : vector<8x32xf32>
    %352 = arith.mulf %336, %344 : vector<8x32xf32>
    %353 = arith.addf %351, %352 : vector<8x32xf32>
    %354 = math.tanh %353 : vector<8x32xf32>
    %355 = arith.mulf %350, %354 : vector<8x32xf32>
    %356 = arith.index_cast %c4_i32 : i32 to index
    %c0_102 = arith.constant 0 : index
    %c0_103 = arith.constant 0 : index
    %357 = vector.load %arg13[%356, %c0_102, %c0_103] : memref<8x8x32xf32, #tpu.memory_space<vmem>>, vector<1x8x32xf32>
    %358 = vector.shape_cast %357 : vector<1x8x32xf32> to vector<8x32xf32>
    %359 = vector.shape_cast %330 : vector<8x32xf32> to vector<1x8x32xf32>
    tpu.vector_store %arg13[%356, %c0_102, %c0_103], %359 {strides = array<i32>} : memref<8x8x32xf32, #tpu.memory_space<vmem>>, vector<1x8x32xf32>,
    %360 = arith.index_cast %295 : i32 to index
    %c0_104 = arith.constant 0 : index
    %c0_105 = arith.constant 0 : index
    %361 = vector.load %arg14[%360, %c0_104, %c0_105] : memref<8x8x32xf32, #tpu.memory_space<vmem>>, vector<1x8x32xf32>
    %362 = vector.shape_cast %361 : vector<1x8x32xf32> to vector<8x32xf32>
    %363 = vector.shape_cast %355 : vector<8x32xf32> to vector<1x8x32xf32>
    tpu.vector_store %arg14[%360, %c0_104, %c0_105], %363 {strides = array<i32>} : memref<8x8x32xf32, #tpu.memory_space<vmem>>, vector<1x8x32xf32>,
    %c5_i32 = arith.constant 5 : i32
    %c7_i32_106 = arith.constant 7 : i32
    %364 = arith.subi %c7_i32_106, %c5_i32 : i32
    %cst_107 = arith.constant dense<0.000000e+00> : vector<8x128xf32>
    %365 = tpu.matmul %330, %16, %cst_107 {dimension_numbers = #tpu.dot_dimension_numbers<[1], [0], [0], [1], [0, 0, 1, 1], [], []>} : vector<8x32xf32>, vector<32x128xf32>, vector<8x128xf32> -> vector<8x128xf32>
    %366 = arith.index_cast %c5_i32 : i32 to index
    %c0_108 = arith.constant 0 : index
    %c0_109 = arith.constant 0 : index
    %367 = vector.load %arg11[%366, %c0_108, %c0_109] : memref<8x8x128xf32, #tpu.memory_space<vmem>>, vector<1x8x128xf32>
    %368 = vector.shape_cast %367 : vector<1x8x128xf32> to vector<8x128xf32>
    %369 = arith.addf %365, %368 : vector<8x128xf32>
    %cst_110 = arith.constant dense<0.000000e+00> : vector<8x128xf32>
    %370 = tpu.matmul %355, %17, %cst_110 {dimension_numbers = #tpu.dot_dimension_numbers<[1], [0], [0], [1], [0, 0, 1, 1], [], []>} : vector<8x32xf32>, vector<32x128xf32>, vector<8x128xf32> -> vector<8x128xf32>
    %371 = arith.index_cast %364 : i32 to index
    %c0_111 = arith.constant 0 : index
    %c0_112 = arith.constant 0 : index
    %372 = vector.load %arg12[%371, %c0_111, %c0_112] : memref<8x8x128xf32, #tpu.memory_space<vmem>>, vector<1x8x128xf32>
    %373 = vector.shape_cast %372 : vector<1x8x128xf32> to vector<8x128xf32>
    %374 = arith.addf %370, %373 : vector<8x128xf32>
    %375 = vector.extract_strided_slice %369 {offsets = [0, 0], sizes = [8, 32], strides = [1, 1]} : vector<8x128xf32> to vector<8x32xf32>
    %376 = arith.negf %375 : vector<8x32xf32>
    %377 = math.exp %376 : vector<8x32xf32>
    %cst_113 = arith.constant 1.000000e+00 : f32
    %378 = vector.broadcast %cst_113 : f32 to vector<8x32xf32>
    %379 = arith.addf %378, %377 : vector<8x32xf32>
    %380 = arith.divf %378, %379 : vector<8x32xf32>
    %381 = vector.extract_strided_slice %369 {offsets = [0, 32], sizes = [8, 32], strides = [1, 1]} : vector<8x128xf32> to vector<8x32xf32>
    %382 = arith.negf %381 : vector<8x32xf32>
    %383 = math.exp %382 : vector<8x32xf32>
    %cst_114 = arith.constant 1.000000e+00 : f32
    %384 = vector.broadcast %cst_114 : f32 to vector<8x32xf32>
    %385 = arith.addf %384, %383 : vector<8x32xf32>
    %386 = arith.divf %384, %385 : vector<8x32xf32>
    %387 = vector.extract_strided_slice %369 {offsets = [0, 64], sizes = [8, 32], strides = [1, 1]} : vector<8x128xf32> to vector<8x32xf32>
    %388 = math.tanh %387 : vector<8x32xf32>
    %389 = vector.extract_strided_slice %369 {offsets = [0, 96], sizes = [8, 32], strides = [1, 1]} : vector<8x128xf32> to vector<8x32xf32>
    %390 = arith.negf %389 : vector<8x32xf32>
    %391 = math.exp %390 : vector<8x32xf32>
    %cst_115 = arith.constant 1.000000e+00 : f32
    %392 = vector.broadcast %cst_115 : f32 to vector<8x32xf32>
    %393 = arith.addf %392, %391 : vector<8x32xf32>
    %394 = arith.divf %392, %393 : vector<8x32xf32>
    %395 = arith.mulf %386, %328 : vector<8x32xf32>
    %396 = arith.mulf %380, %388 : vector<8x32xf32>
    %397 = arith.addf %395, %396 : vector<8x32xf32>
    %398 = math.tanh %397 : vector<8x32xf32>
    %399 = arith.mulf %394, %398 : vector<8x32xf32>
    %400 = vector.extract_strided_slice %374 {offsets = [0, 0], sizes = [8, 32], strides = [1, 1]} : vector<8x128xf32> to vector<8x32xf32>
    %401 = arith.negf %400 : vector<8x32xf32>
    %402 = math.exp %401 : vector<8x32xf32>
    %cst_116 = arith.constant 1.000000e+00 : f32
    %403 = vector.broadcast %cst_116 : f32 to vector<8x32xf32>
    %404 = arith.addf %403, %402 : vector<8x32xf32>
    %405 = arith.divf %403, %404 : vector<8x32xf32>
    %406 = vector.extract_strided_slice %374 {offsets = [0, 32], sizes = [8, 32], strides = [1, 1]} : vector<8x128xf32> to vector<8x32xf32>
    %407 = arith.negf %406 : vector<8x32xf32>
    %408 = math.exp %407 : vector<8x32xf32>
    %cst_117 = arith.constant 1.000000e+00 : f32
    %409 = vector.broadcast %cst_117 : f32 to vector<8x32xf32>
    %410 = arith.addf %409, %408 : vector<8x32xf32>
    %411 = arith.divf %409, %410 : vector<8x32xf32>
    %412 = vector.extract_strided_slice %374 {offsets = [0, 64], sizes = [8, 32], strides = [1, 1]} : vector<8x128xf32> to vector<8x32xf32>
    %413 = math.tanh %412 : vector<8x32xf32>
    %414 = vector.extract_strided_slice %374 {offsets = [0, 96], sizes = [8, 32], strides = [1, 1]} : vector<8x128xf32> to vector<8x32xf32>
    %415 = arith.negf %414 : vector<8x32xf32>
    %416 = math.exp %415 : vector<8x32xf32>
    %cst_118 = arith.constant 1.000000e+00 : f32
    %417 = vector.broadcast %cst_118 : f32 to vector<8x32xf32>
    %418 = arith.addf %417, %416 : vector<8x32xf32>
    %419 = arith.divf %417, %418 : vector<8x32xf32>
    %420 = arith.mulf %411, %353 : vector<8x32xf32>
    %421 = arith.mulf %405, %413 : vector<8x32xf32>
    %422 = arith.addf %420, %421 : vector<8x32xf32>
    %423 = math.tanh %422 : vector<8x32xf32>
    %424 = arith.mulf %419, %423 : vector<8x32xf32>
    %425 = arith.index_cast %c5_i32 : i32 to index
    %c0_119 = arith.constant 0 : index
    %c0_120 = arith.constant 0 : index
    %426 = vector.load %arg13[%425, %c0_119, %c0_120] : memref<8x8x32xf32, #tpu.memory_space<vmem>>, vector<1x8x32xf32>
    %427 = vector.shape_cast %426 : vector<1x8x32xf32> to vector<8x32xf32>
    %428 = vector.shape_cast %399 : vector<8x32xf32> to vector<1x8x32xf32>
    tpu.vector_store %arg13[%425, %c0_119, %c0_120], %428 {strides = array<i32>} : memref<8x8x32xf32, #tpu.memory_space<vmem>>, vector<1x8x32xf32>,
    %429 = arith.index_cast %364 : i32 to index
    %c0_121 = arith.constant 0 : index
    %c0_122 = arith.constant 0 : index
    %430 = vector.load %arg14[%429, %c0_121, %c0_122] : memref<8x8x32xf32, #tpu.memory_space<vmem>>, vector<1x8x32xf32>
    %431 = vector.shape_cast %430 : vector<1x8x32xf32> to vector<8x32xf32>
    %432 = vector.shape_cast %424 : vector<8x32xf32> to vector<1x8x32xf32>
    tpu.vector_store %arg14[%429, %c0_121, %c0_122], %432 {strides = array<i32>} : memref<8x8x32xf32, #tpu.memory_space<vmem>>, vector<1x8x32xf32>,
    %c6_i32 = arith.constant 6 : i32
    %c7_i32_123 = arith.constant 7 : i32
    %433 = arith.subi %c7_i32_123, %c6_i32 : i32
    %cst_124 = arith.constant dense<0.000000e+00> : vector<8x128xf32>
    %434 = tpu.matmul %399, %16, %cst_124 {dimension_numbers = #tpu.dot_dimension_numbers<[1], [0], [0], [1], [0, 0, 1, 1], [], []>} : vector<8x32xf32>, vector<32x128xf32>, vector<8x128xf32> -> vector<8x128xf32>
    %435 = arith.index_cast %c6_i32 : i32 to index
    %c0_125 = arith.constant 0 : index
    %c0_126 = arith.constant 0 : index
    %436 = vector.load %arg11[%435, %c0_125, %c0_126] : memref<8x8x128xf32, #tpu.memory_space<vmem>>, vector<1x8x128xf32>
    %437 = vector.shape_cast %436 : vector<1x8x128xf32> to vector<8x128xf32>
    %438 = arith.addf %434, %437 : vector<8x128xf32>
    %cst_127 = arith.constant dense<0.000000e+00> : vector<8x128xf32>
    %439 = tpu.matmul %424, %17, %cst_127 {dimension_numbers = #tpu.dot_dimension_numbers<[1], [0], [0], [1], [0, 0, 1, 1], [], []>} : vector<8x32xf32>, vector<32x128xf32>, vector<8x128xf32> -> vector<8x128xf32>
    %440 = arith.index_cast %433 : i32 to index
    %c0_128 = arith.constant 0 : index
    %c0_129 = arith.constant 0 : index
    %441 = vector.load %arg12[%440, %c0_128, %c0_129] : memref<8x8x128xf32, #tpu.memory_space<vmem>>, vector<1x8x128xf32>
    %442 = vector.shape_cast %441 : vector<1x8x128xf32> to vector<8x128xf32>
    %443 = arith.addf %439, %442 : vector<8x128xf32>
    %444 = vector.extract_strided_slice %438 {offsets = [0, 0], sizes = [8, 32], strides = [1, 1]} : vector<8x128xf32> to vector<8x32xf32>
    %445 = arith.negf %444 : vector<8x32xf32>
    %446 = math.exp %445 : vector<8x32xf32>
    %cst_130 = arith.constant 1.000000e+00 : f32
    %447 = vector.broadcast %cst_130 : f32 to vector<8x32xf32>
    %448 = arith.addf %447, %446 : vector<8x32xf32>
    %449 = arith.divf %447, %448 : vector<8x32xf32>
    %450 = vector.extract_strided_slice %438 {offsets = [0, 32], sizes = [8, 32], strides = [1, 1]} : vector<8x128xf32> to vector<8x32xf32>
    %451 = arith.negf %450 : vector<8x32xf32>
    %452 = math.exp %451 : vector<8x32xf32>
    %cst_131 = arith.constant 1.000000e+00 : f32
    %453 = vector.broadcast %cst_131 : f32 to vector<8x32xf32>
    %454 = arith.addf %453, %452 : vector<8x32xf32>
    %455 = arith.divf %453, %454 : vector<8x32xf32>
    %456 = vector.extract_strided_slice %438 {offsets = [0, 64], sizes = [8, 32], strides = [1, 1]} : vector<8x128xf32> to vector<8x32xf32>
    %457 = math.tanh %456 : vector<8x32xf32>
    %458 = vector.extract_strided_slice %438 {offsets = [0, 96], sizes = [8, 32], strides = [1, 1]} : vector<8x128xf32> to vector<8x32xf32>
    %459 = arith.negf %458 : vector<8x32xf32>
    %460 = math.exp %459 : vector<8x32xf32>
    %cst_132 = arith.constant 1.000000e+00 : f32
    %461 = vector.broadcast %cst_132 : f32 to vector<8x32xf32>
    %462 = arith.addf %461, %460 : vector<8x32xf32>
    %463 = arith.divf %461, %462 : vector<8x32xf32>
    %464 = arith.mulf %455, %397 : vector<8x32xf32>
    %465 = arith.mulf %449, %457 : vector<8x32xf32>
    %466 = arith.addf %464, %465 : vector<8x32xf32>
    %467 = math.tanh %466 : vector<8x32xf32>
    %468 = arith.mulf %463, %467 : vector<8x32xf32>
    %469 = vector.extract_strided_slice %443 {offsets = [0, 0], sizes = [8, 32], strides = [1, 1]} : vector<8x128xf32> to vector<8x32xf32>
    %470 = arith.negf %469 : vector<8x32xf32>
    %471 = math.exp %470 : vector<8x32xf32>
    %cst_133 = arith.constant 1.000000e+00 : f32
    %472 = vector.broadcast %cst_133 : f32 to vector<8x32xf32>
    %473 = arith.addf %472, %471 : vector<8x32xf32>
    %474 = arith.divf %472, %473 : vector<8x32xf32>
    %475 = vector.extract_strided_slice %443 {offsets = [0, 32], sizes = [8, 32], strides = [1, 1]} : vector<8x128xf32> to vector<8x32xf32>
    %476 = arith.negf %475 : vector<8x32xf32>
    %477 = math.exp %476 : vector<8x32xf32>
    %cst_134 = arith.constant 1.000000e+00 : f32
    %478 = vector.broadcast %cst_134 : f32 to vector<8x32xf32>
    %479 = arith.addf %478, %477 : vector<8x32xf32>
    %480 = arith.divf %478, %479 : vector<8x32xf32>
    %481 = vector.extract_strided_slice %443 {offsets = [0, 64], sizes = [8, 32], strides = [1, 1]} : vector<8x128xf32> to vector<8x32xf32>
    %482 = math.tanh %481 : vector<8x32xf32>
    %483 = vector.extract_strided_slice %443 {offsets = [0, 96], sizes = [8, 32], strides = [1, 1]} : vector<8x128xf32> to vector<8x32xf32>
    %484 = arith.negf %483 : vector<8x32xf32>
    %485 = math.exp %484 : vector<8x32xf32>
    %cst_135 = arith.constant 1.000000e+00 : f32
    %486 = vector.broadcast %cst_135 : f32 to vector<8x32xf32>
    %487 = arith.addf %486, %485 : vector<8x32xf32>
    %488 = arith.divf %486, %487 : vector<8x32xf32>
    %489 = arith.mulf %480, %422 : vector<8x32xf32>
    %490 = arith.mulf %474, %482 : vector<8x32xf32>
    %491 = arith.addf %489, %490 : vector<8x32xf32>
    %492 = math.tanh %491 : vector<8x32xf32>
    %493 = arith.mulf %488, %492 : vector<8x32xf32>
    %494 = arith.index_cast %c6_i32 : i32 to index
    %c0_136 = arith.constant 0 : index
    %c0_137 = arith.constant 0 : index
    %495 = vector.load %arg13[%494, %c0_136, %c0_137] : memref<8x8x32xf32, #tpu.memory_space<vmem>>, vector<1x8x32xf32>
    %496 = vector.shape_cast %495 : vector<1x8x32xf32> to vector<8x32xf32>
    %497 = vector.shape_cast %468 : vector<8x32xf32> to vector<1x8x32xf32>
    tpu.vector_store %arg13[%494, %c0_136, %c0_137], %497 {strides = array<i32>} : memref<8x8x32xf32, #tpu.memory_space<vmem>>, vector<1x8x32xf32>,
    %498 = arith.index_cast %433 : i32 to index
    %c0_138 = arith.constant 0 : index
    %c0_139 = arith.constant 0 : index
    %499 = vector.load %arg14[%498, %c0_138, %c0_139] : memref<8x8x32xf32, #tpu.memory_space<vmem>>, vector<1x8x32xf32>
    %500 = vector.shape_cast %499 : vector<1x8x32xf32> to vector<8x32xf32>
    %501 = vector.shape_cast %493 : vector<8x32xf32> to vector<1x8x32xf32>
    tpu.vector_store %arg14[%498, %c0_138, %c0_139], %501 {strides = array<i32>} : memref<8x8x32xf32, #tpu.memory_space<vmem>>, vector<1x8x32xf32>,
    %c7_i32_140 = arith.constant 7 : i32
    %c7_i32_141 = arith.constant 7 : i32
    %502 = arith.subi %c7_i32_141, %c7_i32_140 : i32
    %cst_142 = arith.constant dense<0.000000e+00> : vector<8x128xf32>
    %503 = tpu.matmul %468, %16, %cst_142 {dimension_numbers = #tpu.dot_dimension_numbers<[1], [0], [0], [1], [0, 0, 1, 1], [], []>} : vector<8x32xf32>, vector<32x128xf32>, vector<8x128xf32> -> vector<8x128xf32>
    %504 = arith.index_cast %c7_i32_140 : i32 to index
    %c0_143 = arith.constant 0 : index
    %c0_144 = arith.constant 0 : index
    %505 = vector.load %arg11[%504, %c0_143, %c0_144] : memref<8x8x128xf32, #tpu.memory_space<vmem>>, vector<1x8x128xf32>
    %506 = vector.shape_cast %505 : vector<1x8x128xf32> to vector<8x128xf32>
    %507 = arith.addf %503, %506 : vector<8x128xf32>
    %cst_145 = arith.constant dense<0.000000e+00> : vector<8x128xf32>
    %508 = tpu.matmul %493, %17, %cst_145 {dimension_numbers = #tpu.dot_dimension_numbers<[1], [0], [0], [1], [0, 0, 1, 1], [], []>} : vector<8x32xf32>, vector<32x128xf32>, vector<8x128xf32> -> vector<8x128xf32>
    %509 = arith.index_cast %502 : i32 to index
    %c0_146 = arith.constant 0 : index
    %c0_147 = arith.constant 0 : index
    %510 = vector.load %arg12[%509, %c0_146, %c0_147] : memref<8x8x128xf32, #tpu.memory_space<vmem>>, vector<1x8x128xf32>
    %511 = vector.shape_cast %510 : vector<1x8x128xf32> to vector<8x128xf32>
    %512 = arith.addf %508, %511 : vector<8x128xf32>
    %513 = vector.extract_strided_slice %507 {offsets = [0, 0], sizes = [8, 32], strides = [1, 1]} : vector<8x128xf32> to vector<8x32xf32>
    %514 = arith.negf %513 : vector<8x32xf32>
    %515 = math.exp %514 : vector<8x32xf32>
    %cst_148 = arith.constant 1.000000e+00 : f32
    %516 = vector.broadcast %cst_148 : f32 to vector<8x32xf32>
    %517 = arith.addf %516, %515 : vector<8x32xf32>
    %518 = arith.divf %516, %517 : vector<8x32xf32>
    %519 = vector.extract_strided_slice %507 {offsets = [0, 32], sizes = [8, 32], strides = [1, 1]} : vector<8x128xf32> to vector<8x32xf32>
    %520 = arith.negf %519 : vector<8x32xf32>
    %521 = math.exp %520 : vector<8x32xf32>
    %cst_149 = arith.constant 1.000000e+00 : f32
    %522 = vector.broadcast %cst_149 : f32 to vector<8x32xf32>
    %523 = arith.addf %522, %521 : vector<8x32xf32>
    %524 = arith.divf %522, %523 : vector<8x32xf32>
    %525 = vector.extract_strided_slice %507 {offsets = [0, 64], sizes = [8, 32], strides = [1, 1]} : vector<8x128xf32> to vector<8x32xf32>
    %526 = math.tanh %525 : vector<8x32xf32>
    %527 = vector.extract_strided_slice %507 {offsets = [0, 96], sizes = [8, 32], strides = [1, 1]} : vector<8x128xf32> to vector<8x32xf32>
    %528 = arith.negf %527 : vector<8x32xf32>
    %529 = math.exp %528 : vector<8x32xf32>
    %cst_150 = arith.constant 1.000000e+00 : f32
    %530 = vector.broadcast %cst_150 : f32 to vector<8x32xf32>
    %531 = arith.addf %530, %529 : vector<8x32xf32>
    %532 = arith.divf %530, %531 : vector<8x32xf32>
    %533 = arith.mulf %524, %466 : vector<8x32xf32>
    %534 = arith.mulf %518, %526 : vector<8x32xf32>
    %535 = arith.addf %533, %534 : vector<8x32xf32>
    %536 = math.tanh %535 : vector<8x32xf32>
    %537 = arith.mulf %532, %536 : vector<8x32xf32>
    %538 = vector.extract_strided_slice %512 {offsets = [0, 0], sizes = [8, 32], strides = [1, 1]} : vector<8x128xf32> to vector<8x32xf32>
    %539 = arith.negf %538 : vector<8x32xf32>
    %540 = math.exp %539 : vector<8x32xf32>
    %cst_151 = arith.constant 1.000000e+00 : f32
    %541 = vector.broadcast %cst_151 : f32 to vector<8x32xf32>
    %542 = arith.addf %541, %540 : vector<8x32xf32>
    %543 = arith.divf %541, %542 : vector<8x32xf32>
    %544 = vector.extract_strided_slice %512 {offsets = [0, 32], sizes = [8, 32], strides = [1, 1]} : vector<8x128xf32> to vector<8x32xf32>
    %545 = arith.negf %544 : vector<8x32xf32>
    %546 = math.exp %545 : vector<8x32xf32>
    %cst_152 = arith.constant 1.000000e+00 : f32
    %547 = vector.broadcast %cst_152 : f32 to vector<8x32xf32>
    %548 = arith.addf %547, %546 : vector<8x32xf32>
    %549 = arith.divf %547, %548 : vector<8x32xf32>
    %550 = vector.extract_strided_slice %512 {offsets = [0, 64], sizes = [8, 32], strides = [1, 1]} : vector<8x128xf32> to vector<8x32xf32>
    %551 = math.tanh %550 : vector<8x32xf32>
    %552 = vector.extract_strided_slice %512 {offsets = [0, 96], sizes = [8, 32], strides = [1, 1]} : vector<8x128xf32> to vector<8x32xf32>
    %553 = arith.negf %552 : vector<8x32xf32>
    %554 = math.exp %553 : vector<8x32xf32>
    %cst_153 = arith.constant 1.000000e+00 : f32
    %555 = vector.broadcast %cst_153 : f32 to vector<8x32xf32>
    %556 = arith.addf %555, %554 : vector<8x32xf32>
    %557 = arith.divf %555, %556 : vector<8x32xf32>
    %558 = arith.mulf %549, %491 : vector<8x32xf32>
    %559 = arith.mulf %543, %551 : vector<8x32xf32>
    %560 = arith.addf %558, %559 : vector<8x32xf32>
    %561 = math.tanh %560 : vector<8x32xf32>
    %562 = arith.mulf %557, %561 : vector<8x32xf32>
    %563 = arith.index_cast %c7_i32_140 : i32 to index
    %c0_154 = arith.constant 0 : index
    %c0_155 = arith.constant 0 : index
    %564 = vector.load %arg13[%563, %c0_154, %c0_155] : memref<8x8x32xf32, #tpu.memory_space<vmem>>, vector<1x8x32xf32>
    %565 = vector.shape_cast %564 : vector<1x8x32xf32> to vector<8x32xf32>
    %566 = vector.shape_cast %537 : vector<8x32xf32> to vector<1x8x32xf32>
    tpu.vector_store %arg13[%563, %c0_154, %c0_155], %566 {strides = array<i32>} : memref<8x8x32xf32, #tpu.memory_space<vmem>>, vector<1x8x32xf32>,
    %567 = arith.index_cast %502 : i32 to index
    %c0_156 = arith.constant 0 : index
    %c0_157 = arith.constant 0 : index
    %568 = vector.load %arg14[%567, %c0_156, %c0_157] : memref<8x8x32xf32, #tpu.memory_space<vmem>>, vector<1x8x32xf32>
    %569 = vector.shape_cast %568 : vector<1x8x32xf32> to vector<8x32xf32>
    %570 = vector.shape_cast %562 : vector<8x32xf32> to vector<1x8x32xf32>
    tpu.vector_store %arg14[%567, %c0_156, %c0_157], %570 {strides = array<i32>} : memref<8x8x32xf32, #tpu.memory_space<vmem>>, vector<1x8x32xf32>,
    %c8_i32 = arith.constant 8 : i32
    %c0_158 = arith.constant 0 : index
    %c0_159 = arith.constant 0 : index
    %c0_160 = arith.constant 0 : index
    %571 = vector.load %arg13[%c0_158, %c0_159, %c0_160] : memref<8x8x32xf32, #tpu.memory_space<vmem>>, vector<8x8x32xf32>
    %572 = vector.shape_cast %571 : vector<8x8x32xf32> to vector<64x32xf32>
    %c0_161 = arith.constant 0 : index
    %c0_162 = arith.constant 0 : index
    %c0_163 = arith.constant 0 : index
    %573 = vector.load %arg14[%c0_161, %c0_162, %c0_163] : memref<8x8x32xf32, #tpu.memory_space<vmem>>, vector<8x8x32xf32>
    %574 = vector.shape_cast %573 : vector<8x8x32xf32> to vector<64x32xf32>
    %c0_164 = arith.constant 0 : index
    %c0_165 = arith.constant 0 : index
    %575 = vector.load %arg7[%c0_164, %c0_165] : memref<32x128xf32, #tpu.memory_space<vmem>>, vector<32x128xf32>
    %cst_166 = arith.constant dense<0.000000e+00> : vector<64x128xf32>
    %576 = tpu.matmul %572, %575, %cst_166 {dimension_numbers = #tpu.dot_dimension_numbers<[1], [0], [0], [1], [0, 0, 1, 1], [], []>} : vector<64x32xf32>, vector<32x128xf32>, vector<64x128xf32> -> vector<64x128xf32>
    %c0_167 = arith.constant 0 : index
    %c0_168 = arith.constant 0 : index
    %577 = vector.load %arg8[%c0_167, %c0_168] : memref<32x128xf32, #tpu.memory_space<vmem>>, vector<32x128xf32>
    %cst_169 = arith.constant dense<0.000000e+00> : vector<64x128xf32>
    %578 = tpu.matmul %574, %577, %cst_169 {dimension_numbers = #tpu.dot_dimension_numbers<[1], [0], [0], [1], [0, 0, 1, 1], [], []>} : vector<64x32xf32>, vector<32x128xf32>, vector<64x128xf32> -> vector<64x128xf32>
    %579 = arith.addf %576, %578 : vector<64x128xf32>
    %c0_170 = arith.constant 0 : index
    %c0_171 = arith.constant 0 : index
    %580 = vector.load %arg9[%c0_170, %c0_171] : memref<1x128xf32, #tpu.memory_space<vmem>>, vector<1x128xf32>
    %581 = vector.broadcast %580 : vector<1x128xf32> to vector<64x128xf32>
    %582 = arith.addf %579, %581 : vector<64x128xf32>
    %583 = vector.shape_cast %582 : vector<64x128xf32> to vector<8x8x128xf32>
    %c0_172 = arith.constant 0 : index
    %c0_173 = arith.constant 0 : index
    %c0_174 = arith.constant 0 : index
    %584 = vector.load %arg10[%c0_172, %c0_173, %c0_174] : memref<8x8x128xf32, #tpu.memory_space<vmem>>, vector<8x8x128xf32>
    tpu.vector_store %arg10[%c0_172, %c0_173, %c0_174], %583 {strides = array<i32>} : memref<8x8x128xf32, #tpu.memory_space<vmem>>, vector<8x8x128xf32>,
    return
  }
}

</mosaic_0001>

<llo_original>
// kernel: bidirectional_lstm_forward.1
$region0: #{bidirectional_lstm_forward.1}
  #allocation0 [shape = 'u32[]', space=smem, size = 0x4, offset = 0x4, fixed_abs, tag = 'smem constant byte address 0x4 - core index']
  #allocation1 [shape = 'u32[72,128]{1,0:T(1,128)}', space=vmem, size = 0x9000, scoped, tag = 'internal scratch']
  #allocation2 [shape = 'f32[8,8,128]{2,1,0:T(8,128)}', space=vmem, size = 0x8000, scoped, tag = 'scratch operand']
  #allocation3 [shape = 'f32[8,8,128]{2,1,0:T(8,128)}', space=vmem, size = 0x8000, scoped, tag = 'scratch operand']
  #allocation4 [shape = 'f32[8,8,32]{2,1,0:T(8,128)}', space=vmem, size = 0x8000, scoped, tag = 'scratch operand']
  #allocation5 [shape = 'f32[8,8,32]{2,1,0:T(8,128)}', space=vmem, size = 0x8000, scoped, tag = 'scratch operand']
  %s0 = inlined_call_operand.vmem [shape: f32[8,8,4], index: 0, kind: input, shape index: {}]
  %s1 = inlined_call_operand.vmem [shape: f32[4,128], index: 1, kind: input, shape index: {}]
  %s2 = inlined_call_operand.vmem [shape: f32[4,128], index: 2, kind: input, shape index: {}]
  %s3 = inlined_call_operand.vmem [shape: f32[32,128], index: 3, kind: input, shape index: {}]
  %s4 = inlined_call_operand.vmem [shape: f32[32,128], index: 4, kind: input, shape index: {}]
  %s5 = inlined_call_operand.vmem [shape: f32[1,128], index: 5, kind: input, shape index: {}]
  %s6 = inlined_call_operand.vmem [shape: f32[1,128], index: 6, kind: input, shape index: {}]
  %s7 = inlined_call_operand.vmem [shape: f32[32,128], index: 7, kind: input, shape index: {}]
  %s8 = inlined_call_operand.vmem [shape: f32[32,128], index: 8, kind: input, shape index: {}]
  %s9 = inlined_call_operand.vmem [shape: f32[1,128], index: 9, kind: input, shape index: {}]
  %s10 = inlined_call_operand.vmem [shape: f32[8,8,128], index: 10, kind: output, shape index: {}]
  %s11 = sld [smem:[#allocation0]]
  $region50: #{bidirectional_lstm_forward.1} parent=0
    _
  %s13 = ssub.s32 1, %s11
  %s14 = scalar_select 0, %s13, %s11
  // Predicated region
  $region2: #{bidirectional_lstm_forward.1} parent=0 // pred_check
    _
  $region3: #{bidirectional_lstm_forward.1} parent=0 // pred_check_branch
    %16 = sbr.rel (0) target = $region5
  $region4: #{bidirectional_lstm_forward.1} parent=0 // pred_region
    _
  $region5: #{bidirectional_lstm_forward.1} parent=0 // pred_fallthru
    _
  // Predicated region
  $region6: #{bidirectional_lstm_forward.1} parent=0 // pred_check
    _
  $region7: #{bidirectional_lstm_forward.1} parent=0 // pred_check_branch
    %18 = sbr.rel (0) target = $region9
  $region8: #{bidirectional_lstm_forward.1} parent=0 // pred_region
    _
  $region9: #{bidirectional_lstm_forward.1} parent=0 // pred_fallthru
    _
  // Predicated region
  $region10: #{bidirectional_lstm_forward.1} parent=0 // pred_check
    _
  $region11: #{bidirectional_lstm_forward.1} parent=0 // pred_check_branch
    %20 = sbr.rel (0) target = $region13
  $region12: #{bidirectional_lstm_forward.1} parent=0 // pred_region
    _
  $region13: #{bidirectional_lstm_forward.1} parent=0 // pred_fallthru
    _
  // Predicated region
  $region14: #{bidirectional_lstm_forward.1} parent=0 // pred_check
    _
  $region15: #{bidirectional_lstm_forward.1} parent=0 // pred_check_branch
    %22 = sbr.rel (0) target = $region17
  $region16: #{bidirectional_lstm_forward.1} parent=0 // pred_region
    _
  $region17: #{bidirectional_lstm_forward.1} parent=0 // pred_fallthru
    _
  // Predicated region
  $region18: #{bidirectional_lstm_forward.1} parent=0 // pred_check
    _
  $region19: #{bidirectional_lstm_forward.1} parent=0 // pred_check_branch
    %24 = sbr.rel (0) target = $region21
  $region20: #{bidirectional_lstm_forward.1} parent=0 // pred_region
    _
  $region21: #{bidirectional_lstm_forward.1} parent=0 // pred_fallthru
    _
  // Predicated region
  $region22: #{bidirectional_lstm_forward.1} parent=0 // pred_check
    _
  $region23: #{bidirectional_lstm_forward.1} parent=0 // pred_check_branch
    %26 = sbr.rel (0) target = $region25
  $region24: #{bidirectional_lstm_forward.1} parent=0 // pred_region
    _
  $region25: #{bidirectional_lstm_forward.1} parent=0 // pred_fallthru
    _
  // Predicated region
  $region26: #{bidirectional_lstm_forward.1} parent=0 // pred_check
    _
  $region27: #{bidirectional_lstm_forward.1} parent=0 // pred_check_branch
    %28 = sbr.rel (0) target = $region29
  $region28: #{bidirectional_lstm_forward.1} parent=0 // pred_region
    _
  $region29: #{bidirectional_lstm_forward.1} parent=0 // pred_fallthru
    _
  // Predicated region
  $region30: #{bidirectional_lstm_forward.1} parent=0 // pred_check
    _
  $region31: #{bidirectional_lstm_forward.1} parent=0 // pred_check_branch
    %30 = sbr.rel (0) target = $region33
  $region32: #{bidirectional_lstm_forward.1} parent=0 // pred_region
    _
  $region33: #{bidirectional_lstm_forward.1} parent=0 // pred_fallthru
    _
  // Predicated region
  $region34: #{bidirectional_lstm_forward.1} parent=0 // pred_check
    _
  $region35: #{bidirectional_lstm_forward.1} parent=0 // pred_check_branch
    %32 = sbr.rel (0) target = $region37
  $region36: #{bidirectional_lstm_forward.1} parent=0 // pred_region
    _
  $region37: #{bidirectional_lstm_forward.1} parent=0 // pred_fallthru
    _
  // Predicated region
  $region38: #{bidirectional_lstm_forward.1} parent=0 // pred_check
    _
  $region39: #{bidirectional_lstm_forward.1} parent=0 // pred_check_branch
    %34 = sbr.rel (0) target = $region41
  $region40: #{bidirectional_lstm_forward.1} parent=0 // pred_region
    _
  $region41: #{bidirectional_lstm_forward.1} parent=0 // pred_fallthru
    _
  %v35 = vld [vmem:[%s0] sm:$0xff]
  %v36 = vld [vmem:[%s0 + $0x8] sm:$0xff]
  %v37 = vld [vmem:[%s0 + $0x10] sm:$0xff]
  %v38 = vld [vmem:[%s0 + $0x18] sm:$0xff]
  %v39 = vld [vmem:[%s0 + $0x20] sm:$0xff]
  %v40 = vld [vmem:[%s0 + $0x28] sm:$0xff]
  %v41 = vld [vmem:[%s0 + $0x30] sm:$0xff]
  %v42 = vld [vmem:[%s0 + $0x38] sm:$0xff]
  %v43 = vld [vmem:[%s1] sm:$0xf]
  %v44 = vld [vmem:[%s5] sm:$0x1]
  %v46 = vperm.slane %v44, 0
  %vm48 = vcmask 31744
  %v50 = vsel %vm48, %v35, 0
  %v53 = vsel %vm48, %v36, 0
  %v56 = vsel %vm48, %v37, 0
  %v59 = vsel %vm48, %v38, 0
  %v62 = vsel %vm48, %v39, 0
  %v65 = vsel %vm48, %v40, 0
  %v68 = vsel %vm48, %v41, 0
  %v71 = vsel %vm48, %v42, 0
  %vm73 = vcmask 1043456
  %v75 = vsel %vm73, %v43, 0
  %77 = vmatpush.msra.mxu0 0.0
  %78 = vmatpush.msra.mxu0 0.0
  %79 = vmatpush.msra.mxu0 0.0
  %80 = vmatpush.msra.mxu0 0.0
  %81 = vmatpush.msra.mxu0 0.0
  %82 = vmatpush.msra.mxu0 0.0
  %83 = vmatpush.msra.mxu0 0.0
  %84 = vmatpush.msra.mxu0 0.0
  %85 = vmatpush.msra.mxu0 0.0
  %86 = vmatpush.msra.mxu0 0.0
  %87 = vmatpush.msra.mxu0 0.0
  %88 = vmatpush.msra.mxu0 0.0
  %89 = vmatpush.msra.mxu0 0.0
  %90 = vmatpush.msra.mxu0 0.0
  %91 = vmatpush.msra.mxu0 0.0
  %92 = vmatpush.msra.mxu0 %v75
  %93 = vmatmul.f32.gmra.mxu0 %v50
  %v94 = vpop.f32.mrf.mxu0
  %v95 = vadd.f32 %v46, %v94
  %96 = vmatmul.f32.gmra.mxu0 %v53
  %v97 = vpop.f32.mrf.mxu0
  %v98 = vadd.f32 %v46, %v97
  %99 = vmatmul.f32.gmra.mxu0 %v56
  %v100 = vpop.f32.mrf.mxu0
  %v101 = vadd.f32 %v46, %v100
  %102 = vmatmul.f32.gmra.mxu0 %v59
  %v103 = vpop.f32.mrf.mxu0
  %v104 = vadd.f32 %v46, %v103
  %105 = vmatmul.f32.gmra.mxu0 %v62
  %v106 = vpop.f32.mrf.mxu0
  %v107 = vadd.f32 %v46, %v106
  %108 = vmatmul.f32.gmra.mxu0 %v65
  %v109 = vpop.f32.mrf.mxu0
  %v110 = vadd.f32 %v46, %v109
  %111 = vmatmul.f32.gmra.mxu0 %v68
  %v112 = vpop.f32.mrf.mxu0
  %v113 = vadd.f32 %v46, %v112
  %114 = vmatmul.f32.gmra.mxu0 %v71
  %v115 = vpop.f32.mrf.mxu0
  %v116 = vadd.f32 %v46, %v115
  %117 = vdwg.mxu0
  %118 = vst [vmem:[#allocation2] sm:$0xff] %v95
  %119 = vst [vmem:[#allocation2 + $0x8] sm:$0xff] %v98
  %120 = vst [vmem:[#allocation2 + $0x10] sm:$0xff] %v101
  %121 = vst [vmem:[#allocation2 + $0x18] sm:$0xff] %v104
  %122 = vst [vmem:[#allocation2 + $0x20] sm:$0xff] %v107
  %123 = vst [vmem:[#allocation2 + $0x28] sm:$0xff] %v110
  %124 = vst [vmem:[#allocation2 + $0x30] sm:$0xff] %v113
  %125 = vst [vmem:[#allocation2 + $0x38] sm:$0xff] %v116
  %v126 = vld [vmem:[%s2] sm:$0xf]
  %v127 = vld [vmem:[%s6] sm:$0x1]
  %v129 = vperm.slane %v127, 0
  %v132 = vsel %vm73, %v126, 0
  %134 = vmatpush.msra.mxu0 0.0
  %135 = vmatpush.msra.mxu0 0.0
  %136 = vmatpush.msra.mxu0 0.0
  %137 = vmatpush.msra.mxu0 0.0
  %138 = vmatpush.msra.mxu0 0.0
  %139 = vmatpush.msra.mxu0 0.0
  %140 = vmatpush.msra.mxu0 0.0
  %141 = vmatpush.msra.mxu0 0.0
  %142 = vmatpush.msra.mxu0 0.0
  %143 = vmatpush.msra.mxu0 0.0
  %144 = vmatpush.msra.mxu0 0.0
  %145 = vmatpush.msra.mxu0 0.0
  %146 = vmatpush.msra.mxu0 0.0
  %147 = vmatpush.msra.mxu0 0.0
  %148 = vmatpush.msra.mxu0 0.0
  %149 = vmatpush.msra.mxu0 %v132
  %150 = vmatmul.f32.gmra.mxu0 %v50
  %v151 = vpop.f32.mrf.mxu0
  %v152 = vadd.f32 %v129, %v151
  %153 = vmatmul.f32.gmra.mxu0 %v53
  %v154 = vpop.f32.mrf.mxu0
  %v155 = vadd.f32 %v129, %v154
  %156 = vmatmul.f32.gmra.mxu0 %v56
  %v157 = vpop.f32.mrf.mxu0
  %v158 = vadd.f32 %v129, %v157
  %159 = vmatmul.f32.gmra.mxu0 %v59
  %v160 = vpop.f32.mrf.mxu0
  %v161 = vadd.f32 %v129, %v160
  %162 = vmatmul.f32.gmra.mxu0 %v62
  %v163 = vpop.f32.mrf.mxu0
  %v164 = vadd.f32 %v129, %v163
  %165 = vmatmul.f32.gmra.mxu0 %v65
  %v166 = vpop.f32.mrf.mxu0
  %v167 = vadd.f32 %v129, %v166
  %168 = vmatmul.f32.gmra.mxu0 %v68
  %v169 = vpop.f32.mrf.mxu0
  %v170 = vadd.f32 %v129, %v169
  %171 = vmatmul.f32.gmra.mxu0 %v71
  %v172 = vpop.f32.mrf.mxu0
  %v173 = vadd.f32 %v129, %v172
  %174 = vdwg.mxu0
  %175 = vst [vmem:[#allocation3] sm:$0xff] %v152
  %176 = vst [vmem:[#allocation3 + $0x8] sm:$0xff] %v155
  %177 = vst [vmem:[#allocation3 + $0x10] sm:$0xff] %v158
  %178 = vst [vmem:[#allocation3 + $0x18] sm:$0xff] %v161
  %179 = vst [vmem:[#allocation3 + $0x20] sm:$0xff] %v164
  %180 = vst [vmem:[#allocation3 + $0x28] sm:$0xff] %v167
  %181 = vst [vmem:[#allocation3 + $0x30] sm:$0xff] %v170
  %182 = vst [vmem:[#allocation3 + $0x38] sm:$0xff] %v173
  %v183 = vld [vmem:[%s3] sm:$0xff]
  %v184 = vld [vmem:[%s3 + $0x8] sm:$0xff]
  %v185 = vld [vmem:[%s3 + $0x10] sm:$0xff]
  %v186 = vld [vmem:[%s3 + $0x18] sm:$0xff]
  %v187 = vld [vmem:[%s4] sm:$0xff]
  %v188 = vld [vmem:[%s4 + $0x8] sm:$0xff]
  %v189 = vld [vmem:[%s4 + $0x10] sm:$0xff]
  %v190 = vld [vmem:[%s4 + $0x18] sm:$0xff]
  %v191 = vld [vmem:[#allocation2] sm:$0xff]
  %vm192 = vcmask 261120
  %v194 = vsel %vm192, 0.0, 0
  %196 = vmatpush.msra.mxu0 0.0
  %197 = vmatpush.msra.mxu0 0.0
  %198 = vmatpush.msra.mxu0 0.0
  %199 = vmatpush.msra.mxu0 0.0
  %200 = vmatpush.msra.mxu0 0.0
  %201 = vmatpush.msra.mxu0 0.0
  %202 = vmatpush.msra.mxu0 0.0
  %203 = vmatpush.msra.mxu0 0.0
  %204 = vmatpush.msra.mxu0 0.0
  %205 = vmatpush.msra.mxu0 0.0
  %206 = vmatpush.msra.mxu0 0.0
  %207 = vmatpush.msra.mxu0 0.0
  %208 = vmatpush.msra.mxu0 %v186
  %209 = vmatpush.msra.mxu0 %v185
  %210 = vmatpush.msra.mxu0 %v184
  %211 = vmatpush.msra.mxu0 %v183
  %212 = vmatmul.f32.gmra.mxu0 %v194
  %v213 = vpop.f32.mrf.mxu0
  %v214 = vadd.f32 %v191, %v213
  %215 = vdwg.mxu0
  %s216 = scalar_lea.vmem [#allocation3], 56
  %v217 = vld [vmem:[%s216] sm:$0xff]
  %218 = vmatpush.msra.mxu0 0.0
  %219 = vmatpush.msra.mxu0 0.0
  %220 = vmatpush.msra.mxu0 0.0
  %221 = vmatpush.msra.mxu0 0.0
  %222 = vmatpush.msra.mxu0 0.0
  %223 = vmatpush.msra.mxu0 0.0
  %224 = vmatpush.msra.mxu0 0.0
  %225 = vmatpush.msra.mxu0 0.0
  %226 = vmatpush.msra.mxu0 0.0
  %227 = vmatpush.msra.mxu0 0.0
  %228 = vmatpush.msra.mxu0 0.0
  %229 = vmatpush.msra.mxu0 0.0
  %230 = vmatpush.msra.mxu0 %v190
  %231 = vmatpush.msra.mxu0 %v189
  %232 = vmatpush.msra.mxu0 %v188
  %233 = vmatpush.msra.mxu0 %v187
  %234 = vmatmul.f32.gmra.mxu0 %v194
  %v235 = vpop.f32.mrf.mxu0
  %v236 = vadd.f32 %v217, %v235
  %237 = vdwg.mxu0
  %v238 = vxor.u32 %v214, 2147483648
  %v239 = vmul.f32 %v238, 1.442695
  %v240 = vpow.pop %v239
  %v241 = vadd.f32 %v240, 1.0
  %v242 = vrcp.pop %v241
  %v243 = vmul.f32 %v241, %v242
  %v244 = vsub.f32 1.0, %v243
  %v245 = vmul.f32 %v242, %v244
  %v246 = vadd.f32 %v242, %v245
  %vm247 = vweird.f32 %v241
  %vm248 = vweird.f32 %v242
  %vm249 = vmor %vm247, %vm248
  %v250 = vsel %vm249, %v242, %v246
  %v251 = vand.u32 2147483647, %v241
  %vm252 = vcmp.eq.f32.partialorder %v251, 8.507059e+37
  %v253 = vand.u32 %v241, 2147483648
  %v254 = vor.u32 1.1754944e-38, %v253
  %v255 = vsel %vm252, %v254, %v250
  %v256 = vmul.f32 1.0, %v255
  %v257 = vtanh.pop %v214
  %v258 = vmul.f32 %v256, 0.0
  %260 = vrot.lane.b32.xlu0 %v257, 64
  %v261 = vpop.permute.xlu0 %260
  %v263 = vmul.f32 %v256, %v261
  %265 = vrot.lane.b32.xlu0 %v263, 32
  %v266 = vpop.permute.xlu0 %265
  %v268 = vadd.f32 %v258, %v266
  %v269 = vtanh.pop %v268
  %271 = vrot.lane.b32.xlu0 %v269, 64
  %v272 = vpop.permute.xlu0 %271
  %v274 = vmul.f32 %v256, %v272
  %v275 = vxor.u32 %v236, 2147483648
  %v276 = vmul.f32 %v275, 1.442695
  %v277 = vpow.pop %v276
  %v278 = vadd.f32 %v277, 1.0
  %v279 = vrcp.pop %v278
  %v280 = vmul.f32 %v278, %v279
  %v281 = vsub.f32 1.0, %v280
  %v282 = vmul.f32 %v279, %v281
  %v283 = vadd.f32 %v279, %v282
  %vm284 = vweird.f32 %v278
  %vm285 = vweird.f32 %v279
  %vm286 = vmor %vm284, %vm285
  %v287 = vsel %vm286, %v279, %v283
  %v288 = vand.u32 2147483647, %v278
  %vm289 = vcmp.eq.f32.partialorder %v288, 8.507059e+37
  %v290 = vand.u32 %v278, 2147483648
  %v291 = vor.u32 1.1754944e-38, %v290
  %v292 = vsel %vm289, %v291, %v287
  %v293 = vmul.f32 1.0, %v292
  %v294 = vtanh.pop %v236
  %v295 = vmul.f32 %v293, 0.0
  %297 = vrot.lane.b32.xlu0 %v294, 64
  %v298 = vpop.permute.xlu0 %297
  %v300 = vmul.f32 %v293, %v298
  %302 = vrot.lane.b32.xlu0 %v300, 32
  %v303 = vpop.permute.xlu0 %302
  %v305 = vadd.f32 %v295, %v303
  %v306 = vtanh.pop %v305
  %308 = vrot.lane.b32.xlu0 %v306, 64
  %v309 = vpop.permute.xlu0 %308
  %v311 = vmul.f32 %v293, %v309
  %313 = vrot.lane.b32.xlu0 %v274, 32
  %v314 = vpop.permute.xlu0 %313
  %316 = vst.msk [vmem:[#allocation4] sm:$0xff] %vm192, %v314
  %318 = vrot.lane.b32.xlu0 %v311, 32
  %v319 = vpop.permute.xlu0 %318
  %s321 = scalar_lea.vmem [#allocation5], 56
  %322 = vst.msk [vmem:[%s321] sm:$0xff] %vm192, %v319
  %s323 = scalar_lea.vmem [#allocation2], 8
  %v324 = vld [vmem:[%s323] sm:$0xff]
  %v325 = vsel %vm192, %v314, 0
  %327 = vmatpush.msra.mxu0 0.0
  %328 = vmatpush.msra.mxu0 0.0
  %329 = vmatpush.msra.mxu0 0.0
  %330 = vmatpush.msra.mxu0 0.0
  %331 = vmatpush.msra.mxu0 0.0
  %332 = vmatpush.msra.mxu0 0.0
  %333 = vmatpush.msra.mxu0 0.0
  %334 = vmatpush.msra.mxu0 0.0
  %335 = vmatpush.msra.mxu0 0.0
  %336 = vmatpush.msra.mxu0 0.0
  %337 = vmatpush.msra.mxu0 0.0
  %338 = vmatpush.msra.mxu0 0.0
  %339 = vmatpush.msra.mxu0 %v186
  %340 = vmatpush.msra.mxu0 %v185
  %341 = vmatpush.msra.mxu0 %v184
  %342 = vmatpush.msra.mxu0 %v183
  %343 = vmatmul.f32.gmra.mxu0 %v325
  %v344 = vpop.f32.mrf.mxu0
  %v345 = vadd.f32 %v324, %v344
  %346 = vdwg.mxu0
  %s347 = scalar_lea.vmem [#allocation3], 48
  %v348 = vld [vmem:[%s347] sm:$0xff]
  %v349 = vsel %vm192, %v319, 0
  %351 = vmatpush.msra.mxu0 0.0
  %352 = vmatpush.msra.mxu0 0.0
  %353 = vmatpush.msra.mxu0 0.0
  %354 = vmatpush.msra.mxu0 0.0
  %355 = vmatpush.msra.mxu0 0.0
  %356 = vmatpush.msra.mxu0 0.0
  %357 = vmatpush.msra.mxu0 0.0
  %358 = vmatpush.msra.mxu0 0.0
  %359 = vmatpush.msra.mxu0 0.0
  %360 = vmatpush.msra.mxu0 0.0
  %361 = vmatpush.msra.mxu0 0.0
  %362 = vmatpush.msra.mxu0 0.0
  %363 = vmatpush.msra.mxu0 %v190
  %364 = vmatpush.msra.mxu0 %v189
  %365 = vmatpush.msra.mxu0 %v188
  %366 = vmatpush.msra.mxu0 %v187
  %367 = vmatmul.f32.gmra.mxu0 %v349
  %v368 = vpop.f32.mrf.mxu0
  %v369 = vadd.f32 %v348, %v368
  %370 = vdwg.mxu0
  %v371 = vxor.u32 %v345, 2147483648
  %v372 = vmul.f32 %v371, 1.442695
  %v373 = vpow.pop %v372
  %v374 = vadd.f32 %v373, 1.0
  %v375 = vrcp.pop %v374
  %v376 = vmul.f32 %v374, %v375
  %v377 = vsub.f32 1.0, %v376
  %v378 = vmul.f32 %v375, %v377
  %v379 = vadd.f32 %v375, %v378
  %vm380 = vweird.f32 %v374
  %vm381 = vweird.f32 %v375
  %vm382 = vmor %vm380, %vm381
  %v383 = vsel %vm382, %v375, %v379
  %v384 = vand.u32 2147483647, %v374
  %vm385 = vcmp.eq.f32.partialorder %v384, 8.507059e+37
  %v386 = vand.u32 %v374, 2147483648
  %v387 = vor.u32 1.1754944e-38, %v386
  %v388 = vsel %vm385, %v387, %v383
  %v389 = vmul.f32 1.0, %v388
  %v390 = vtanh.pop %v345
  %v391 = vmul.f32 %v389, %v268
  %393 = vrot.lane.b32.xlu0 %v390, 64
  %v394 = vpop.permute.xlu0 %393
  %v396 = vmul.f32 %v389, %v394
  %398 = vrot.lane.b32.xlu0 %v396, 32
  %v399 = vpop.permute.xlu0 %398
  %v401 = vadd.f32 %v391, %v399
  %v402 = vtanh.pop %v401
  %404 = vrot.lane.b32.xlu0 %v402, 64
  %v405 = vpop.permute.xlu0 %404
  %v407 = vmul.f32 %v389, %v405
  %v408 = vxor.u32 %v369, 2147483648
  %v409 = vmul.f32 %v408, 1.442695
  %v410 = vpow.pop %v409
  %v411 = vadd.f32 %v410, 1.0
  %v412 = vrcp.pop %v411
  %v413 = vmul.f32 %v411, %v412
  %v414 = vsub.f32 1.0, %v413
  %v415 = vmul.f32 %v412, %v414
  %v416 = vadd.f32 %v412, %v415
  %vm417 = vweird.f32 %v411
  %vm418 = vweird.f32 %v412
  %vm419 = vmor %vm417, %vm418
  %v420 = vsel %vm419, %v412, %v416
  %v421 = vand.u32 2147483647, %v411
  %vm422 = vcmp.eq.f32.partialorder %v421, 8.507059e+37
  %v423 = vand.u32 %v411, 2147483648
  %v424 = vor.u32 1.1754944e-38, %v423
  %v425 = vsel %vm422, %v424, %v420
  %v426 = vmul.f32 1.0, %v425
  %v427 = vtanh.pop %v369
  %v428 = vmul.f32 %v426, %v305
  %430 = vrot.lane.b32.xlu0 %v427, 64
  %v431 = vpop.permute.xlu0 %430
  %v433 = vmul.f32 %v426, %v431
  %435 = vrot.lane.b32.xlu0 %v433, 32
  %v436 = vpop.permute.xlu0 %435
  %v438 = vadd.f32 %v428, %v436
  %v439 = vtanh.pop %v438
  %441 = vrot.lane.b32.xlu0 %v439, 64
  %v442 = vpop.permute.xlu0 %441
  %v444 = vmul.f32 %v426, %v442
  %446 = vrot.lane.b32.xlu0 %v407, 32
  %v447 = vpop.permute.xlu0 %446
  %s449 = scalar_lea.vmem [#allocation4], 8
  %450 = vst.msk [vmem:[%s449] sm:$0xff] %vm192, %v447
  %452 = vrot.lane.b32.xlu0 %v444, 32
  %v453 = vpop.permute.xlu0 %452
  %s455 = scalar_lea.vmem [#allocation5], 48
  %456 = vst.msk [vmem:[%s455] sm:$0xff] %vm192, %v453
  %s457 = scalar_lea.vmem [#allocation2], 16
  %v458 = vld [vmem:[%s457] sm:$0xff]
  %v459 = vsel %vm192, %v447, 0
  %461 = vmatpush.msra.mxu0 0.0
  %462 = vmatpush.msra.mxu0 0.0
  %463 = vmatpush.msra.mxu0 0.0
  %464 = vmatpush.msra.mxu0 0.0
  %465 = vmatpush.msra.mxu0 0.0
  %466 = vmatpush.msra.mxu0 0.0
  %467 = vmatpush.msra.mxu0 0.0
  %468 = vmatpush.msra.mxu0 0.0
  %469 = vmatpush.msra.mxu0 0.0
  %470 = vmatpush.msra.mxu0 0.0
  %471 = vmatpush.msra.mxu0 0.0
  %472 = vmatpush.msra.mxu0 0.0
  %473 = vmatpush.msra.mxu0 %v186
  %474 = vmatpush.msra.mxu0 %v185
  %475 = vmatpush.msra.mxu0 %v184
  %476 = vmatpush.msra.mxu0 %v183
  %477 = vmatmul.f32.gmra.mxu0 %v459
  %v478 = vpop.f32.mrf.mxu0
  %v479 = vadd.f32 %v458, %v478
  %480 = vdwg.mxu0
  %s481 = scalar_lea.vmem [#allocation3], 40
  %v482 = vld [vmem:[%s481] sm:$0xff]
  %v483 = vsel %vm192, %v453, 0
  %485 = vmatpush.msra.mxu0 0.0
  %486 = vmatpush.msra.mxu0 0.0
  %487 = vmatpush.msra.mxu0 0.0
  %488 = vmatpush.msra.mxu0 0.0
  %489 = vmatpush.msra.mxu0 0.0
  %490 = vmatpush.msra.mxu0 0.0
  %491 = vmatpush.msra.mxu0 0.0
  %492 = vmatpush.msra.mxu0 0.0
  %493 = vmatpush.msra.mxu0 0.0
  %494 = vmatpush.msra.mxu0 0.0
  %495 = vmatpush.msra.mxu0 0.0
  %496 = vmatpush.msra.mxu0 0.0
  %497 = vmatpush.msra.mxu0 %v190
  %498 = vmatpush.msra.mxu0 %v189
  %499 = vmatpush.msra.mxu0 %v188
  %500 = vmatpush.msra.mxu0 %v187
  %501 = vmatmul.f32.gmra.mxu0 %v483
  %v502 = vpop.f32.mrf.mxu0
  %v503 = vadd.f32 %v482, %v502
  %504 = vdwg.mxu0
  %v505 = vxor.u32 %v479, 2147483648
  %v506 = vmul.f32 %v505, 1.442695
  %v507 = vpow.pop %v506
  %v508 = vadd.f32 %v507, 1.0
  %v509 = vrcp.pop %v508
  %v510 = vmul.f32 %v508, %v509
  %v511 = vsub.f32 1.0, %v510
  %v512 = vmul.f32 %v509, %v511
  %v513 = vadd.f32 %v509, %v512
  %vm514 = vweird.f32 %v508
  %vm515 = vweird.f32 %v509
  %vm516 = vmor %vm514, %vm515
  %v517 = vsel %vm516, %v509, %v513
  %v518 = vand.u32 2147483647, %v508
  %vm519 = vcmp.eq.f32.partialorder %v518, 8.507059e+37
  %v520 = vand.u32 %v508, 2147483648
  %v521 = vor.u32 1.1754944e-38, %v520
  %v522 = vsel %vm519, %v521, %v517
  %v523 = vmul.f32 1.0, %v522
  %v524 = vtanh.pop %v479
  %v525 = vmul.f32 %v523, %v401
  %527 = vrot.lane.b32.xlu0 %v524, 64
  %v528 = vpop.permute.xlu0 %527
  %v530 = vmul.f32 %v523, %v528
  %532 = vrot.lane.b32.xlu0 %v530, 32
  %v533 = vpop.permute.xlu0 %532
  %v535 = vadd.f32 %v525, %v533
  %v536 = vtanh.pop %v535
  %538 = vrot.lane.b32.xlu0 %v536, 64
  %v539 = vpop.permute.xlu0 %538
  %v541 = vmul.f32 %v523, %v539
  %v542 = vxor.u32 %v503, 2147483648
  %v543 = vmul.f32 %v542, 1.442695
  %v544 = vpow.pop %v543
  %v545 = vadd.f32 %v544, 1.0
  %v546 = vrcp.pop %v545
  %v547 = vmul.f32 %v545, %v546
  %v548 = vsub.f32 1.0, %v547
  %v549 = vmul.f32 %v546, %v548
  %v550 = vadd.f32 %v546, %v549
  %vm551 = vweird.f32 %v545
  %vm552 = vweird.f32 %v546
  %vm553 = vmor %vm551, %vm552
  %v554 = vsel %vm553, %v546, %v550
  %v555 = vand.u32 2147483647, %v545
  %vm556 = vcmp.eq.f32.partialorder %v555, 8.507059e+37
  %v557 = vand.u32 %v545, 2147483648
  %v558 = vor.u32 1.1754944e-38, %v557
  %v559 = vsel %vm556, %v558, %v554
  %v560 = vmul.f32 1.0, %v559
  %v561 = vtanh.pop %v503
  %v562 = vmul.f32 %v560, %v438
  %564 = vrot.lane.b32.xlu0 %v561, 64
  %v565 = vpop.permute.xlu0 %564
  %v567 = vmul.f32 %v560, %v565
  %569 = vrot.lane.b32.xlu0 %v567, 32
  %v570 = vpop.permute.xlu0 %569
  %v572 = vadd.f32 %v562, %v570
  %v573 = vtanh.pop %v572
  %575 = vrot.lane.b32.xlu0 %v573, 64
  %v576 = vpop.permute.xlu0 %575
  %v578 = vmul.f32 %v560, %v576
  %580 = vrot.lane.b32.xlu0 %v541, 32
  %v581 = vpop.permute.xlu0 %580
  %s583 = scalar_lea.vmem [#allocation4], 16
  %584 = vst.msk [vmem:[%s583] sm:$0xff] %vm192, %v581
  %586 = vrot.lane.b32.xlu0 %v578, 32
  %v587 = vpop.permute.xlu0 %586
  %s589 = scalar_lea.vmem [#allocation5], 40
  %590 = vst.msk [vmem:[%s589] sm:$0xff] %vm192, %v587
  %s591 = scalar_lea.vmem [#allocation2], 24
  %v592 = vld [vmem:[%s591] sm:$0xff]
  %v593 = vsel %vm192, %v581, 0
  %595 = vmatpush.msra.mxu0 0.0
  %596 = vmatpush.msra.mxu0 0.0
  %597 = vmatpush.msra.mxu0 0.0
  %598 = vmatpush.msra.mxu0 0.0
  %599 = vmatpush.msra.mxu0 0.0
  %600 = vmatpush.msra.mxu0 0.0
  %601 = vmatpush.msra.mxu0 0.0
  %602 = vmatpush.msra.mxu0 0.0
  %603 = vmatpush.msra.mxu0 0.0
  %604 = vmatpush.msra.mxu0 0.0
  %605 = vmatpush.msra.mxu0 0.0
  %606 = vmatpush.msra.mxu0 0.0
  %607 = vmatpush.msra.mxu0 %v186
  %608 = vmatpush.msra.mxu0 %v185
  %609 = vmatpush.msra.mxu0 %v184
  %610 = vmatpush.msra.mxu0 %v183
  %611 = vmatmul.f32.gmra.mxu0 %v593
  %v612 = vpop.f32.mrf.mxu0
  %v613 = vadd.f32 %v592, %v612
  %614 = vdwg.mxu0
  %s615 = scalar_lea.vmem [#allocation3], 32
  %v616 = vld [vmem:[%s615] sm:$0xff]
  %v617 = vsel %vm192, %v587, 0
  %619 = vmatpush.msra.mxu0 0.0
  %620 = vmatpush.msra.mxu0 0.0
  %621 = vmatpush.msra.mxu0 0.0
  %622 = vmatpush.msra.mxu0 0.0
  %623 = vmatpush.msra.mxu0 0.0
  %624 = vmatpush.msra.mxu0 0.0
  %625 = vmatpush.msra.mxu0 0.0
  %626 = vmatpush.msra.mxu0 0.0
  %627 = vmatpush.msra.mxu0 0.0
  %628 = vmatpush.msra.mxu0 0.0
  %629 = vmatpush.msra.mxu0 0.0
  %630 = vmatpush.msra.mxu0 0.0
  %631 = vmatpush.msra.mxu0 %v190
  %632 = vmatpush.msra.mxu0 %v189
  %633 = vmatpush.msra.mxu0 %v188
  %634 = vmatpush.msra.mxu0 %v187
  %635 = vmatmul.f32.gmra.mxu0 %v617
  %v636 = vpop.f32.mrf.mxu0
  %v637 = vadd.f32 %v616, %v636
  %638 = vdwg.mxu0
  %v639 = vxor.u32 %v613, 2147483648
  %v640 = vmul.f32 %v639, 1.442695
  %v641 = vpow.pop %v640
  %v642 = vadd.f32 %v641, 1.0
  %v643 = vrcp.pop %v642
  %v644 = vmul.f32 %v642, %v643
  %v645 = vsub.f32 1.0, %v644
  %v646 = vmul.f32 %v643, %v645
  %v647 = vadd.f32 %v643, %v646
  %vm648 = vweird.f32 %v642
  %vm649 = vweird.f32 %v643
  %vm650 = vmor %vm648, %vm649
  %v651 = vsel %vm650, %v643, %v647
  %v652 = vand.u32 2147483647, %v642
  %vm653 = vcmp.eq.f32.partialorder %v652, 8.507059e+37
  %v654 = vand.u32 %v642, 2147483648
  %v655 = vor.u32 1.1754944e-38, %v654
  %v656 = vsel %vm653, %v655, %v651
  %v657 = vmul.f32 1.0, %v656
  %v658 = vtanh.pop %v613
  %v659 = vmul.f32 %v657, %v535
  %661 = vrot.lane.b32.xlu0 %v658, 64
  %v662 = vpop.permute.xlu0 %661
  %v664 = vmul.f32 %v657, %v662
  %666 = vrot.lane.b32.xlu0 %v664, 32
  %v667 = vpop.permute.xlu0 %666
  %v669 = vadd.f32 %v659, %v667
  %v670 = vtanh.pop %v669
  %672 = vrot.lane.b32.xlu0 %v670, 64
  %v673 = vpop.permute.xlu0 %672
  %v675 = vmul.f32 %v657, %v673
  %v676 = vxor.u32 %v637, 2147483648
  %v677 = vmul.f32 %v676, 1.442695
  %v678 = vpow.pop %v677
  %v679 = vadd.f32 %v678, 1.0
  %v680 = vrcp.pop %v679
  %v681 = vmul.f32 %v679, %v680
  %v682 = vsub.f32 1.0, %v681
  %v683 = vmul.f32 %v680, %v682
  %v684 = vadd.f32 %v680, %v683
  %vm685 = vweird.f32 %v679
  %vm686 = vweird.f32 %v680
  %vm687 = vmor %vm685, %vm686
  %v688 = vsel %vm687, %v680, %v684
  %v689 = vand.u32 2147483647, %v679
  %vm690 = vcmp.eq.f32.partialorder %v689, 8.507059e+37
  %v691 = vand.u32 %v679, 2147483648
  %v692 = vor.u32 1.1754944e-38, %v691
  %v693 = vsel %vm690, %v692, %v688
  %v694 = vmul.f32 1.0, %v693
  %v695 = vtanh.pop %v637
  %v696 = vmul.f32 %v694, %v572
  %698 = vrot.lane.b32.xlu0 %v695, 64
  %v699 = vpop.permute.xlu0 %698
  %v701 = vmul.f32 %v694, %v699
  %703 = vrot.lane.b32.xlu0 %v701, 32
  %v704 = vpop.permute.xlu0 %703
  %v706 = vadd.f32 %v696, %v704
  %v707 = vtanh.pop %v706
  %709 = vrot.lane.b32.xlu0 %v707, 64
  %v710 = vpop.permute.xlu0 %709
  %v712 = vmul.f32 %v694, %v710
  %714 = vrot.lane.b32.xlu0 %v675, 32
  %v715 = vpop.permute.xlu0 %714
  %s717 = scalar_lea.vmem [#allocation4], 24
  %718 = vst.msk [vmem:[%s717] sm:$0xff] %vm192, %v715
  %720 = vrot.lane.b32.xlu0 %v712, 32
  %v721 = vpop.permute.xlu0 %720
  %s723 = scalar_lea.vmem [#allocation5], 32
  %724 = vst.msk [vmem:[%s723] sm:$0xff] %vm192, %v721
  %s725 = scalar_lea.vmem [#allocation2], 32
  %v726 = vld [vmem:[%s725] sm:$0xff]
  %v727 = vsel %vm192, %v715, 0
  %729 = vmatpush.msra.mxu0 0.0
  %730 = vmatpush.msra.mxu0 0.0
  %731 = vmatpush.msra.mxu0 0.0
  %732 = vmatpush.msra.mxu0 0.0
  %733 = vmatpush.msra.mxu0 0.0
  %734 = vmatpush.msra.mxu0 0.0
  %735 = vmatpush.msra.mxu0 0.0
  %736 = vmatpush.msra.mxu0 0.0
  %737 = vmatpush.msra.mxu0 0.0
  %738 = vmatpush.msra.mxu0 0.0
  %739 = vmatpush.msra.mxu0 0.0
  %740 = vmatpush.msra.mxu0 0.0
  %741 = vmatpush.msra.mxu0 %v186
  %742 = vmatpush.msra.mxu0 %v185
  %743 = vmatpush.msra.mxu0 %v184
  %744 = vmatpush.msra.mxu0 %v183
  %745 = vmatmul.f32.gmra.mxu0 %v727
  %v746 = vpop.f32.mrf.mxu0
  %v747 = vadd.f32 %v726, %v746
  %748 = vdwg.mxu0
  %s749 = scalar_lea.vmem [#allocation3], 24
  %v750 = vld [vmem:[%s749] sm:$0xff]
  %v751 = vsel %vm192, %v721, 0
  %753 = vmatpush.msra.mxu0 0.0
  %754 = vmatpush.msra.mxu0 0.0
  %755 = vmatpush.msra.mxu0 0.0
  %756 = vmatpush.msra.mxu0 0.0
  %757 = vmatpush.msra.mxu0 0.0
  %758 = vmatpush.msra.mxu0 0.0
  %759 = vmatpush.msra.mxu0 0.0
  %760 = vmatpush.msra.mxu0 0.0
  %761 = vmatpush.msra.mxu0 0.0
  %762 = vmatpush.msra.mxu0 0.0
  %763 = vmatpush.msra.mxu0 0.0
  %764 = vmatpush.msra.mxu0 0.0
  %765 = vmatpush.msra.mxu0 %v190
  %766 = vmatpush.msra.mxu0 %v189
  %767 = vmatpush.msra.mxu0 %v188
  %768 = vmatpush.msra.mxu0 %v187
  %769 = vmatmul.f32.gmra.mxu0 %v751
  %v770 = vpop.f32.mrf.mxu0
  %v771 = vadd.f32 %v750, %v770
  %772 = vdwg.mxu0
  %v773 = vxor.u32 %v747, 2147483648
  %v774 = vmul.f32 %v773, 1.442695
  %v775 = vpow.pop %v774
  %v776 = vadd.f32 %v775, 1.0
  %v777 = vrcp.pop %v776
  %v778 = vmul.f32 %v776, %v777
  %v779 = vsub.f32 1.0, %v778
  %v780 = vmul.f32 %v777, %v779
  %v781 = vadd.f32 %v777, %v780
  %vm782 = vweird.f32 %v776
  %vm783 = vweird.f32 %v777
  %vm784 = vmor %vm782, %vm783
  %v785 = vsel %vm784, %v777, %v781
  %v786 = vand.u32 2147483647, %v776
  %vm787 = vcmp.eq.f32.partialorder %v786, 8.507059e+37
  %v788 = vand.u32 %v776, 2147483648
  %v789 = vor.u32 1.1754944e-38, %v788
  %v790 = vsel %vm787, %v789, %v785
  %v791 = vmul.f32 1.0, %v790
  %v792 = vtanh.pop %v747
  %v793 = vmul.f32 %v791, %v669
  %795 = vrot.lane.b32.xlu0 %v792, 64
  %v796 = vpop.permute.xlu0 %795
  %v798 = vmul.f32 %v791, %v796
  %800 = vrot.lane.b32.xlu0 %v798, 32
  %v801 = vpop.permute.xlu0 %800
  %v803 = vadd.f32 %v793, %v801
  %v804 = vtanh.pop %v803
  %806 = vrot.lane.b32.xlu0 %v804, 64
  %v807 = vpop.permute.xlu0 %806
  %v809 = vmul.f32 %v791, %v807
  %v810 = vxor.u32 %v771, 2147483648
  %v811 = vmul.f32 %v810, 1.442695
  %v812 = vpow.pop %v811
  %v813 = vadd.f32 %v812, 1.0
  %v814 = vrcp.pop %v813
  %v815 = vmul.f32 %v813, %v814
  %v816 = vsub.f32 1.0, %v815
  %v817 = vmul.f32 %v814, %v816
  %v818 = vadd.f32 %v814, %v817
  %vm819 = vweird.f32 %v813
  %vm820 = vweird.f32 %v814
  %vm821 = vmor %vm819, %vm820
  %v822 = vsel %vm821, %v814, %v818
  %v823 = vand.u32 2147483647, %v813
  %vm824 = vcmp.eq.f32.partialorder %v823, 8.507059e+37
  %v825 = vand.u32 %v813, 2147483648
  %v826 = vor.u32 1.1754944e-38, %v825
  %v827 = vsel %vm824, %v826, %v822
  %v828 = vmul.f32 1.0, %v827
  %v829 = vtanh.pop %v771
  %v830 = vmul.f32 %v828, %v706
  %832 = vrot.lane.b32.xlu0 %v829, 64
  %v833 = vpop.permute.xlu0 %832
  %v835 = vmul.f32 %v828, %v833
  %837 = vrot.lane.b32.xlu0 %v835, 32
  %v838 = vpop.permute.xlu0 %837
  %v840 = vadd.f32 %v830, %v838
  %v841 = vtanh.pop %v840
  %843 = vrot.lane.b32.xlu0 %v841, 64
  %v844 = vpop.permute.xlu0 %843
  %v846 = vmul.f32 %v828, %v844
  %848 = vrot.lane.b32.xlu0 %v809, 32
  %v849 = vpop.permute.xlu0 %848
  %s851 = scalar_lea.vmem [#allocation4], 32
  %852 = vst.msk [vmem:[%s851] sm:$0xff] %vm192, %v849
  %854 = vrot.lane.b32.xlu0 %v846, 32
  %v855 = vpop.permute.xlu0 %854
  %s857 = scalar_lea.vmem [#allocation5], 24
  %858 = vst.msk [vmem:[%s857] sm:$0xff] %vm192, %v855
  %s859 = scalar_lea.vmem [#allocation2], 40
  %v860 = vld [vmem:[%s859] sm:$0xff]
  %v861 = vsel %vm192, %v849, 0
  %863 = vmatpush.msra.mxu0 0.0
  %864 = vmatpush.msra.mxu0 0.0
  %865 = vmatpush.msra.mxu0 0.0
  %866 = vmatpush.msra.mxu0 0.0
  %867 = vmatpush.msra.mxu0 0.0
  %868 = vmatpush.msra.mxu0 0.0
  %869 = vmatpush.msra.mxu0 0.0
  %870 = vmatpush.msra.mxu0 0.0
  %871 = vmatpush.msra.mxu0 0.0
  %872 = vmatpush.msra.mxu0 0.0
  %873 = vmatpush.msra.mxu0 0.0
  %874 = vmatpush.msra.mxu0 0.0
  %875 = vmatpush.msra.mxu0 %v186
  %876 = vmatpush.msra.mxu0 %v185
  %877 = vmatpush.msra.mxu0 %v184
  %878 = vmatpush.msra.mxu0 %v183
  %879 = vmatmul.f32.gmra.mxu0 %v861
  %v880 = vpop.f32.mrf.mxu0
  %v881 = vadd.f32 %v860, %v880
  %882 = vdwg.mxu0
  %s883 = scalar_lea.vmem [#allocation3], 16
  %v884 = vld [vmem:[%s883] sm:$0xff]
  %v885 = vsel %vm192, %v855, 0
  %887 = vmatpush.msra.mxu0 0.0
  %888 = vmatpush.msra.mxu0 0.0
  %889 = vmatpush.msra.mxu0 0.0
  %890 = vmatpush.msra.mxu0 0.0
  %891 = vmatpush.msra.mxu0 0.0
  %892 = vmatpush.msra.mxu0 0.0
  %893 = vmatpush.msra.mxu0 0.0
  %894 = vmatpush.msra.mxu0 0.0
  %895 = vmatpush.msra.mxu0 0.0
  %896 = vmatpush.msra.mxu0 0.0
  %897 = vmatpush.msra.mxu0 0.0
  %898 = vmatpush.msra.mxu0 0.0
  %899 = vmatpush.msra.mxu0 %v190
  %900 = vmatpush.msra.mxu0 %v189
  %901 = vmatpush.msra.mxu0 %v188
  %902 = vmatpush.msra.mxu0 %v187
  %903 = vmatmul.f32.gmra.mxu0 %v885
  %v904 = vpop.f32.mrf.mxu0
  %v905 = vadd.f32 %v884, %v904
  %906 = vdwg.mxu0
  %v907 = vxor.u32 %v881, 2147483648
  %v908 = vmul.f32 %v907, 1.442695
  %v909 = vpow.pop %v908
  %v910 = vadd.f32 %v909, 1.0
  %v911 = vrcp.pop %v910
  %v912 = vmul.f32 %v910, %v911
  %v913 = vsub.f32 1.0, %v912
  %v914 = vmul.f32 %v911, %v913
  %v915 = vadd.f32 %v911, %v914
  %vm916 = vweird.f32 %v910
  %vm917 = vweird.f32 %v911
  %vm918 = vmor %vm916, %vm917
  %v919 = vsel %vm918, %v911, %v915
  %v920 = vand.u32 2147483647, %v910
  %vm921 = vcmp.eq.f32.partialorder %v920, 8.507059e+37
  %v922 = vand.u32 %v910, 2147483648
  %v923 = vor.u32 1.1754944e-38, %v922
  %v924 = vsel %vm921, %v923, %v919
  %v925 = vmul.f32 1.0, %v924
  %v926 = vtanh.pop %v881
  %v927 = vmul.f32 %v925, %v803
  %929 = vrot.lane.b32.xlu0 %v926, 64
  %v930 = vpop.permute.xlu0 %929
  %v932 = vmul.f32 %v925, %v930
  %934 = vrot.lane.b32.xlu0 %v932, 32
  %v935 = vpop.permute.xlu0 %934
  %v937 = vadd.f32 %v927, %v935
  %v938 = vtanh.pop %v937
  %940 = vrot.lane.b32.xlu0 %v938, 64
  %v941 = vpop.permute.xlu0 %940
  %v943 = vmul.f32 %v925, %v941
  %v944 = vxor.u32 %v905, 2147483648
  %v945 = vmul.f32 %v944, 1.442695
  %v946 = vpow.pop %v945
  %v947 = vadd.f32 %v946, 1.0
  %v948 = vrcp.pop %v947
  %v949 = vmul.f32 %v947, %v948
  %v950 = vsub.f32 1.0, %v949
  %v951 = vmul.f32 %v948, %v950
  %v952 = vadd.f32 %v948, %v951
  %vm953 = vweird.f32 %v947
  %vm954 = vweird.f32 %v948
  %vm955 = vmor %vm953, %vm954
  %v956 = vsel %vm955, %v948, %v952
  %v957 = vand.u32 2147483647, %v947
  %vm958 = vcmp.eq.f32.partialorder %v957, 8.507059e+37
  %v959 = vand.u32 %v947, 2147483648
  %v960 = vor.u32 1.1754944e-38, %v959
  %v961 = vsel %vm958, %v960, %v956
  %v962 = vmul.f32 1.0, %v961
  %v963 = vtanh.pop %v905
  %v964 = vmul.f32 %v962, %v840
  %966 = vrot.lane.b32.xlu0 %v963, 64
  %v967 = vpop.permute.xlu0 %966
  %v969 = vmul.f32 %v962, %v967
  %971 = vrot.lane.b32.xlu0 %v969, 32
  %v972 = vpop.permute.xlu0 %971
  %v974 = vadd.f32 %v964, %v972
  %v975 = vtanh.pop %v974
  %977 = vrot.lane.b32.xlu0 %v975, 64
  %v978 = vpop.permute.xlu0 %977
  %v980 = vmul.f32 %v962, %v978
  %982 = vrot.lane.b32.xlu0 %v943, 32
  %v983 = vpop.permute.xlu0 %982
  %s985 = scalar_lea.vmem [#allocation4], 40
  %986 = vst.msk [vmem:[%s985] sm:$0xff] %vm192, %v983
  %988 = vrot.lane.b32.xlu0 %v980, 32
  %v989 = vpop.permute.xlu0 %988
  %s991 = scalar_lea.vmem [#allocation5], 16
  %992 = vst.msk [vmem:[%s991] sm:$0xff] %vm192, %v989
  %s993 = scalar_lea.vmem [#allocation2], 48
  %v994 = vld [vmem:[%s993] sm:$0xff]
  %v995 = vsel %vm192, %v983, 0
  %997 = vmatpush.msra.mxu0 0.0
  %998 = vmatpush.msra.mxu0 0.0
  %999 = vmatpush.msra.mxu0 0.0
  %1000 = vmatpush.msra.mxu0 0.0
  %1001 = vmatpush.msra.mxu0 0.0
  %1002 = vmatpush.msra.mxu0 0.0
  %1003 = vmatpush.msra.mxu0 0.0
  %1004 = vmatpush.msra.mxu0 0.0
  %1005 = vmatpush.msra.mxu0 0.0
  %1006 = vmatpush.msra.mxu0 0.0
  %1007 = vmatpush.msra.mxu0 0.0
  %1008 = vmatpush.msra.mxu0 0.0
  %1009 = vmatpush.msra.mxu0 %v186
  %1010 = vmatpush.msra.mxu0 %v185
  %1011 = vmatpush.msra.mxu0 %v184
  %1012 = vmatpush.msra.mxu0 %v183
  %1013 = vmatmul.f32.gmra.mxu0 %v995
  %v1014 = vpop.f32.mrf.mxu0
  %v1015 = vadd.f32 %v994, %v1014
  %1016 = vdwg.mxu0
  %s1017 = scalar_lea.vmem [#allocation3], 8
  %v1018 = vld [vmem:[%s1017] sm:$0xff]
  %v1019 = vsel %vm192, %v989, 0
  %1021 = vmatpush.msra.mxu0 0.0
  %1022 = vmatpush.msra.mxu0 0.0
  %1023 = vmatpush.msra.mxu0 0.0
  %1024 = vmatpush.msra.mxu0 0.0
  %1025 = vmatpush.msra.mxu0 0.0
  %1026 = vmatpush.msra.mxu0 0.0
  %1027 = vmatpush.msra.mxu0 0.0
  %1028 = vmatpush.msra.mxu0 0.0
  %1029 = vmatpush.msra.mxu0 0.0
  %1030 = vmatpush.msra.mxu0 0.0
  %1031 = vmatpush.msra.mxu0 0.0
  %1032 = vmatpush.msra.mxu0 0.0
  %1033 = vmatpush.msra.mxu0 %v190
  %1034 = vmatpush.msra.mxu0 %v189
  %1035 = vmatpush.msra.mxu0 %v188
  %1036 = vmatpush.msra.mxu0 %v187
  %1037 = vmatmul.f32.gmra.mxu0 %v1019
  %v1038 = vpop.f32.mrf.mxu0
  %v1039 = vadd.f32 %v1018, %v1038
  %1040 = vdwg.mxu0
  %v1041 = vxor.u32 %v1015, 2147483648
  %v1042 = vmul.f32 %v1041, 1.442695
  %v1043 = vpow.pop %v1042
  %v1044 = vadd.f32 %v1043, 1.0
  %v1045 = vrcp.pop %v1044
  %v1046 = vmul.f32 %v1044, %v1045
  %v1047 = vsub.f32 1.0, %v1046
  %v1048 = vmul.f32 %v1045, %v1047
  %v1049 = vadd.f32 %v1045, %v1048
  %vm1050 = vweird.f32 %v1044
  %vm1051 = vweird.f32 %v1045
  %vm1052 = vmor %vm1050, %vm1051
  %v1053 = vsel %vm1052, %v1045, %v1049
  %v1054 = vand.u32 2147483647, %v1044
  %vm1055 = vcmp.eq.f32.partialorder %v1054, 8.507059e+37
  %v1056 = vand.u32 %v1044, 2147483648
  %v1057 = vor.u32 1.1754944e-38, %v1056
  %v1058 = vsel %vm1055, %v1057, %v1053
  %v1059 = vmul.f32 1.0, %v1058
  %v1060 = vtanh.pop %v1015
  %v1061 = vmul.f32 %v1059, %v937
  %1063 = vrot.lane.b32.xlu0 %v1060, 64
  %v1064 = vpop.permute.xlu0 %1063
  %v1066 = vmul.f32 %v1059, %v1064
  %1068 = vrot.lane.b32.xlu0 %v1066, 32
  %v1069 = vpop.permute.xlu0 %1068
  %v1071 = vadd.f32 %v1061, %v1069
  %v1072 = vtanh.pop %v1071
  %1074 = vrot.lane.b32.xlu0 %v1072, 64
  %v1075 = vpop.permute.xlu0 %1074
  %v1077 = vmul.f32 %v1059, %v1075
  %v1078 = vxor.u32 %v1039, 2147483648
  %v1079 = vmul.f32 %v1078, 1.442695
  %v1080 = vpow.pop %v1079
  %v1081 = vadd.f32 %v1080, 1.0
  %v1082 = vrcp.pop %v1081
  %v1083 = vmul.f32 %v1081, %v1082
  %v1084 = vsub.f32 1.0, %v1083
  %v1085 = vmul.f32 %v1082, %v1084
  %v1086 = vadd.f32 %v1082, %v1085
  %vm1087 = vweird.f32 %v1081
  %vm1088 = vweird.f32 %v1082
  %vm1089 = vmor %vm1087, %vm1088
  %v1090 = vsel %vm1089, %v1082, %v1086
  %v1091 = vand.u32 2147483647, %v1081
  %vm1092 = vcmp.eq.f32.partialorder %v1091, 8.507059e+37
  %v1093 = vand.u32 %v1081, 2147483648
  %v1094 = vor.u32 1.1754944e-38, %v1093
  %v1095 = vsel %vm1092, %v1094, %v1090
  %v1096 = vmul.f32 1.0, %v1095
  %v1097 = vtanh.pop %v1039
  %v1098 = vmul.f32 %v1096, %v974
  %1100 = vrot.lane.b32.xlu0 %v1097, 64
  %v1101 = vpop.permute.xlu0 %1100
  %v1103 = vmul.f32 %v1096, %v1101
  %1105 = vrot.lane.b32.xlu0 %v1103, 32
  %v1106 = vpop.permute.xlu0 %1105
  %v1108 = vadd.f32 %v1098, %v1106
  %v1109 = vtanh.pop %v1108
  %1111 = vrot.lane.b32.xlu0 %v1109, 64
  %v1112 = vpop.permute.xlu0 %1111
  %v1114 = vmul.f32 %v1096, %v1112
  %1116 = vrot.lane.b32.xlu0 %v1077, 32
  %v1117 = vpop.permute.xlu0 %1116
  %s1119 = scalar_lea.vmem [#allocation4], 48
  %1120 = vst.msk [vmem:[%s1119] sm:$0xff] %vm192, %v1117
  %1122 = vrot.lane.b32.xlu0 %v1114, 32
  %v1123 = vpop.permute.xlu0 %1122
  %s1125 = scalar_lea.vmem [#allocation5], 8
  %1126 = vst.msk [vmem:[%s1125] sm:$0xff] %vm192, %v1123
  %s1127 = scalar_lea.vmem [#allocation2], 56
  %v1128 = vld [vmem:[%s1127] sm:$0xff]
  %v1129 = vsel %vm192, %v1117, 0
  %1131 = vmatpush.msra.mxu0 0.0
  %1132 = vmatpush.msra.mxu0 0.0
  %1133 = vmatpush.msra.mxu0 0.0
  %1134 = vmatpush.msra.mxu0 0.0
  %1135 = vmatpush.msra.mxu0 0.0
  %1136 = vmatpush.msra.mxu0 0.0
  %1137 = vmatpush.msra.mxu0 0.0
  %1138 = vmatpush.msra.mxu0 0.0
  %1139 = vmatpush.msra.mxu0 0.0
  %1140 = vmatpush.msra.mxu0 0.0
  %1141 = vmatpush.msra.mxu0 0.0
  %1142 = vmatpush.msra.mxu0 0.0
  %1143 = vmatpush.msra.mxu0 %v186
  %1144 = vmatpush.msra.mxu0 %v185
  %1145 = vmatpush.msra.mxu0 %v184
  %1146 = vmatpush.msra.mxu0 %v183
  %1147 = vmatmul.f32.gmra.mxu0 %v1129
  %v1148 = vpop.f32.mrf.mxu0
  %v1149 = vadd.f32 %v1128, %v1148
  %1150 = vdwg.mxu0
  %v1151 = vld [vmem:[#allocation3] sm:$0xff]
  %v1152 = vsel %vm192, %v1123, 0
  %1154 = vmatpush.msra.mxu0 0.0
  %1155 = vmatpush.msra.mxu0 0.0
  %1156 = vmatpush.msra.mxu0 0.0
  %1157 = vmatpush.msra.mxu0 0.0
  %1158 = vmatpush.msra.mxu0 0.0
  %1159 = vmatpush.msra.mxu0 0.0
  %1160 = vmatpush.msra.mxu0 0.0
  %1161 = vmatpush.msra.mxu0 0.0
  %1162 = vmatpush.msra.mxu0 0.0
  %1163 = vmatpush.msra.mxu0 0.0
  %1164 = vmatpush.msra.mxu0 0.0
  %1165 = vmatpush.msra.mxu0 0.0
  %1166 = vmatpush.msra.mxu0 %v190
  %1167 = vmatpush.msra.mxu0 %v189
  %1168 = vmatpush.msra.mxu0 %v188
  %1169 = vmatpush.msra.mxu0 %v187
  %1170 = vmatmul.f32.gmra.mxu0 %v1152
  %v1171 = vpop.f32.mrf.mxu0
  %v1172 = vadd.f32 %v1151, %v1171
  %1173 = vdwg.mxu0
  %v1174 = vxor.u32 %v1149, 2147483648
  %v1175 = vmul.f32 %v1174, 1.442695
  %v1176 = vpow.pop %v1175
  %v1177 = vadd.f32 %v1176, 1.0
  %v1178 = vrcp.pop %v1177
  %v1179 = vmul.f32 %v1177, %v1178
  %v1180 = vsub.f32 1.0, %v1179
  %v1181 = vmul.f32 %v1178, %v1180
  %v1182 = vadd.f32 %v1178, %v1181
  %vm1183 = vweird.f32 %v1177
  %vm1184 = vweird.f32 %v1178
  %vm1185 = vmor %vm1183, %vm1184
  %v1186 = vsel %vm1185, %v1178, %v1182
  %v1187 = vand.u32 2147483647, %v1177
  %vm1188 = vcmp.eq.f32.partialorder %v1187, 8.507059e+37
  %v1189 = vand.u32 %v1177, 2147483648
  %v1190 = vor.u32 1.1754944e-38, %v1189
  %v1191 = vsel %vm1188, %v1190, %v1186
  %v1192 = vmul.f32 1.0, %v1191
  %v1193 = vtanh.pop %v1149
  %v1194 = vmul.f32 %v1192, %v1071
  %1196 = vrot.lane.b32.xlu0 %v1193, 64
  %v1197 = vpop.permute.xlu0 %1196
  %v1199 = vmul.f32 %v1192, %v1197
  %1201 = vrot.lane.b32.xlu0 %v1199, 32
  %v1202 = vpop.permute.xlu0 %1201
  %v1204 = vadd.f32 %v1194, %v1202
  %v1205 = vtanh.pop %v1204
  %1207 = vrot.lane.b32.xlu0 %v1205, 64
  %v1208 = vpop.permute.xlu0 %1207
  %v1210 = vmul.f32 %v1192, %v1208
  %v1211 = vxor.u32 %v1172, 2147483648
  %v1212 = vmul.f32 %v1211, 1.442695
  %v1213 = vpow.pop %v1212
  %v1214 = vadd.f32 %v1213, 1.0
  %v1215 = vrcp.pop %v1214
  %v1216 = vmul.f32 %v1214, %v1215
  %v1217 = vsub.f32 1.0, %v1216
  %v1218 = vmul.f32 %v1215, %v1217
  %v1219 = vadd.f32 %v1215, %v1218
  %vm1220 = vweird.f32 %v1214
  %vm1221 = vweird.f32 %v1215
  %vm1222 = vmor %vm1220, %vm1221
  %v1223 = vsel %vm1222, %v1215, %v1219
  %v1224 = vand.u32 2147483647, %v1214
  %vm1225 = vcmp.eq.f32.partialorder %v1224, 8.507059e+37
  %v1226 = vand.u32 %v1214, 2147483648
  %v1227 = vor.u32 1.1754944e-38, %v1226
  %v1228 = vsel %vm1225, %v1227, %v1223
  %v1229 = vmul.f32 1.0, %v1228
  %v1230 = vtanh.pop %v1172
  %v1231 = vmul.f32 %v1229, %v1108
  %1233 = vrot.lane.b32.xlu0 %v1230, 64
  %v1234 = vpop.permute.xlu0 %1233
  %v1236 = vmul.f32 %v1229, %v1234
  %1238 = vrot.lane.b32.xlu0 %v1236, 32
  %v1239 = vpop.permute.xlu0 %1238
  %v1241 = vadd.f32 %v1231, %v1239
  %v1242 = vtanh.pop %v1241
  %1244 = vrot.lane.b32.xlu0 %v1242, 64
  %v1245 = vpop.permute.xlu0 %1244
  %v1247 = vmul.f32 %v1229, %v1245
  %1249 = vrot.lane.b32.xlu0 %v1210, 32
  %v1250 = vpop.permute.xlu0 %1249
  %s1252 = scalar_lea.vmem [#allocation4], 56
  %1253 = vst.msk [vmem:[%s1252] sm:$0xff] %vm192, %v1250
  %1255 = vrot.lane.b32.xlu0 %v1247, 32
  %v1256 = vpop.permute.xlu0 %1255
  %1258 = vst.msk [vmem:[#allocation5] sm:$0xff] %vm192, %v1256
  %v1259 = vld [vmem:[#allocation4] sm:$0xff]
  %v1260 = vld [vmem:[#allocation4 + $0x8] sm:$0xff]
  %v1261 = vld [vmem:[#allocation4 + $0x10] sm:$0xff]
  %v1262 = vld [vmem:[#allocation4 + $0x18] sm:$0xff]
  %v1263 = vld [vmem:[#allocation4 + $0x20] sm:$0xff]
  %v1264 = vld [vmem:[#allocation4 + $0x28] sm:$0xff]
  %v1265 = vld [vmem:[#allocation4 + $0x30] sm:$0xff]
  %v1266 = vld [vmem:[#allocation4 + $0x38] sm:$0xff]
  %v1267 = vld [vmem:[#allocation5] sm:$0xff]
  %v1268 = vld [vmem:[#allocation5 + $0x8] sm:$0xff]
  %v1269 = vld [vmem:[#allocation5 + $0x10] sm:$0xff]
  %v1270 = vld [vmem:[#allocation5 + $0x18] sm:$0xff]
  %v1271 = vld [vmem:[#allocation5 + $0x20] sm:$0xff]
  %v1272 = vld [vmem:[#allocation5 + $0x28] sm:$0xff]
  %v1273 = vld [vmem:[#allocation5 + $0x30] sm:$0xff]
  %v1274 = vld [vmem:[#allocation5 + $0x38] sm:$0xff]
  %v1275 = vld [vmem:[%s7] sm:$0xff]
  %v1276 = vld [vmem:[%s7 + $0x8] sm:$0xff]
  %v1277 = vld [vmem:[%s7 + $0x10] sm:$0xff]
  %v1278 = vld [vmem:[%s7 + $0x18] sm:$0xff]
  %v1279 = vld [vmem:[%s8] sm:$0xff]
  %v1280 = vld [vmem:[%s8 + $0x8] sm:$0xff]
  %v1281 = vld [vmem:[%s8 + $0x10] sm:$0xff]
  %v1282 = vld [vmem:[%s8 + $0x18] sm:$0xff]
  %v1284 = vsel %vm192, %v1267, 0
  %v1287 = vsel %vm192, %v1268, 0
  %v1290 = vsel %vm192, %v1269, 0
  %v1293 = vsel %vm192, %v1270, 0
  %v1296 = vsel %vm192, %v1271, 0
  %v1299 = vsel %vm192, %v1272, 0
  %v1302 = vsel %vm192, %v1273, 0
  %v1305 = vsel %vm192, %v1274, 0
  %1307 = vmatpush.msra.mxu0 0.0
  %1308 = vmatpush.msra.mxu0 0.0
  %1309 = vmatpush.msra.mxu0 0.0
  %1310 = vmatpush.msra.mxu0 0.0
  %1311 = vmatpush.msra.mxu0 0.0
  %1312 = vmatpush.msra.mxu0 0.0
  %1313 = vmatpush.msra.mxu0 0.0
  %1314 = vmatpush.msra.mxu0 0.0
  %1315 = vmatpush.msra.mxu0 0.0
  %1316 = vmatpush.msra.mxu0 0.0
  %1317 = vmatpush.msra.mxu0 0.0
  %1318 = vmatpush.msra.mxu0 0.0
  %1319 = vmatpush.msra.mxu0 %v1282
  %1320 = vmatpush.msra.mxu0 %v1281
  %1321 = vmatpush.msra.mxu0 %v1280
  %1322 = vmatpush.msra.mxu0 %v1279
  %1323 = vmatmul.f32.gmra.mxu0 %v1284
  %v1324 = vpop.f32.mrf.mxu0
  %v1325 = vadd.f32 0.0, %v1324
  %1326 = vmatmul.f32.gmra.mxu0 %v1287
  %v1327 = vpop.f32.mrf.mxu0
  %v1328 = vadd.f32 0.0, %v1327
  %1329 = vmatmul.f32.gmra.mxu0 %v1290
  %v1330 = vpop.f32.mrf.mxu0
  %v1331 = vadd.f32 0.0, %v1330
  %1332 = vmatmul.f32.gmra.mxu0 %v1293
  %v1333 = vpop.f32.mrf.mxu0
  %v1334 = vadd.f32 0.0, %v1333
  %1335 = vmatmul.f32.gmra.mxu0 %v1296
  %v1336 = vpop.f32.mrf.mxu0
  %v1337 = vadd.f32 0.0, %v1336
  %1338 = vmatmul.f32.gmra.mxu0 %v1299
  %v1339 = vpop.f32.mrf.mxu0
  %v1340 = vadd.f32 0.0, %v1339
  %1341 = vmatmul.f32.gmra.mxu0 %v1302
  %v1342 = vpop.f32.mrf.mxu0
  %v1343 = vadd.f32 0.0, %v1342
  %1344 = vmatmul.f32.gmra.mxu0 %v1305
  %v1345 = vpop.f32.mrf.mxu0
  %v1346 = vadd.f32 0.0, %v1345
  %1347 = vdwg.mxu0
  %v1349 = vsel %vm192, %v1259, 0
  %v1352 = vsel %vm192, %v1260, 0
  %v1355 = vsel %vm192, %v1261, 0
  %v1358 = vsel %vm192, %v1262, 0
  %v1361 = vsel %vm192, %v1263, 0
  %v1364 = vsel %vm192, %v1264, 0
  %v1367 = vsel %vm192, %v1265, 0
  %v1370 = vsel %vm192, %v1266, 0
  %1372 = vmatpush.msra.mxu0 0.0
  %1373 = vmatpush.msra.mxu0 0.0
  %1374 = vmatpush.msra.mxu0 0.0
  %1375 = vmatpush.msra.mxu0 0.0
  %1376 = vmatpush.msra.mxu0 0.0
  %1377 = vmatpush.msra.mxu0 0.0
  %1378 = vmatpush.msra.mxu0 0.0
  %1379 = vmatpush.msra.mxu0 0.0
  %1380 = vmatpush.msra.mxu0 0.0
  %1381 = vmatpush.msra.mxu0 0.0
  %1382 = vmatpush.msra.mxu0 0.0
  %1383 = vmatpush.msra.mxu0 0.0
  %1384 = vmatpush.msra.mxu0 %v1278
  %1385 = vmatpush.msra.mxu0 %v1277
  %1386 = vmatpush.msra.mxu0 %v1276
  %1387 = vmatpush.msra.mxu0 %v1275
  %1388 = vmatmul.f32.gmra.mxu0 %v1349
  %v1389 = vpop.f32.mrf.mxu0
  %v1390 = vadd.f32 %v1325, %v1389
  %1391 = vmatmul.f32.gmra.mxu0 %v1352
  %v1392 = vpop.f32.mrf.mxu0
  %v1393 = vadd.f32 %v1328, %v1392
  %1394 = vmatmul.f32.gmra.mxu0 %v1355
  %v1395 = vpop.f32.mrf.mxu0
  %v1396 = vadd.f32 %v1331, %v1395
  %1397 = vmatmul.f32.gmra.mxu0 %v1358
  %v1398 = vpop.f32.mrf.mxu0
  %v1399 = vadd.f32 %v1334, %v1398
  %1400 = vmatmul.f32.gmra.mxu0 %v1361
  %v1401 = vpop.f32.mrf.mxu0
  %v1402 = vadd.f32 %v1337, %v1401
  %1403 = vmatmul.f32.gmra.mxu0 %v1364
  %v1404 = vpop.f32.mrf.mxu0
  %v1405 = vadd.f32 %v1340, %v1404
  %1406 = vmatmul.f32.gmra.mxu0 %v1367
  %v1407 = vpop.f32.mrf.mxu0
  %v1408 = vadd.f32 %v1343, %v1407
  %1409 = vmatmul.f32.gmra.mxu0 %v1370
  %v1410 = vpop.f32.mrf.mxu0
  %v1411 = vadd.f32 %v1346, %v1410
  %1412 = vdwg.mxu0
  %v1413 = vld [vmem:[%s9] sm:$0x1]
  %v1415 = vperm.slane %v1413, 0
  %v1417 = vadd.f32 %v1390, %v1415
  %v1418 = vadd.f32 %v1393, %v1415
  %v1419 = vadd.f32 %v1396, %v1415
  %v1420 = vadd.f32 %v1399, %v1415
  %v1421 = vadd.f32 %v1402, %v1415
  %v1422 = vadd.f32 %v1405, %v1415
  %v1423 = vadd.f32 %v1408, %v1415
  %v1424 = vadd.f32 %v1411, %v1415
  %1425 = vst [vmem:[%s10] sm:$0xff] %v1417
  %1426 = vst [vmem:[%s10 + $0x8] sm:$0xff] %v1418
  %1427 = vst [vmem:[%s10 + $0x10] sm:$0xff] %v1419
  %1428 = vst [vmem:[%s10 + $0x18] sm:$0xff] %v1420
  %1429 = vst [vmem:[%s10 + $0x20] sm:$0xff] %v1421
  %1430 = vst [vmem:[%s10 + $0x28] sm:$0xff] %v1422
  %1431 = vst [vmem:[%s10 + $0x30] sm:$0xff] %v1423
  %1432 = vst [vmem:[%s10 + $0x38] sm:$0xff] %v1424
  // Predicated region
  $region42: #{bidirectional_lstm_forward.1} parent=0 // pred_check
    _
  $region43: #{bidirectional_lstm_forward.1} parent=0 // pred_check_branch
    %1434 = sbr.rel (0) target = $region45
  $region44: #{bidirectional_lstm_forward.1} parent=0 // pred_region
    _
  $region45: #{bidirectional_lstm_forward.1} parent=0 // pred_fallthru
    _
  // Predicated region
  $region46: #{bidirectional_lstm_forward.1} parent=0 // pred_check
    _
  $region47: #{bidirectional_lstm_forward.1} parent=0 // pred_check_branch
    %1436 = sbr.rel (0) target = $region49
  $region48: #{bidirectional_lstm_forward.1} parent=0 // pred_region
    _
  $region49: #{bidirectional_lstm_forward.1} parent=0 // pred_fallthru
    _

</llo_original>
